<compile_context>
chip_gen: v7x
topology: tpu7x:2x2x1
jax: 0.10.0
libtpu: 0.0.40
codegen_flags: <defaults>
</compile_context>

<pallas_src>
import functools

import jax
import jax.numpy as jnp
from jax.experimental import pallas as pl
from jax.experimental.pallas import tpu as pltpu


# -----------------------------------------------------------------------------
# Kernel
# -----------------------------------------------------------------------------
def _value_net_kernel(num_layers, seq_length, hidden_size, batch_block, *refs):
    """LSTM recurrence + MLP head, all resident in VMEM.

    refs layout:
      refs[0]                : x block, (1, T*Bb, input_size) bf16, t-major rows
      refs[1 : 1+2*L]        : per-layer (w_ih_T, w_hh_T), bf16, gates [i,f,o,g]
      refs[1+2*L]            : packed LSTM biases, (L, 1, 4H) f32
      refs[2+2*L : 6+2*L]    : fc1_w (T,H,F1) bf16, fc1_b (1,F1) f32,
                               fc2_w (F1,Cpad) bf16, fc2_b (1,Cpad) f32
      refs[-2]               : out block (Bb, Cpad) f32
      refs[-1]               : hseq scratch (T*Bb, H) bf16 (inter-layer staging)
    """
    H = hidden_size
    T = seq_length
    Bb = batch_block

    x_ref = refs[0]
    w_refs = refs[1:1 + 2 * num_layers]
    (lstm_b_ref, fc1_w_ref, fc1_b_ref, fc2_w_ref, fc2_b_ref,
     out_ref, hseq_ref) = refs[1 + 2 * num_layers:]

    F1 = fc1_w_ref.shape[-1]
    fc1_acc = jnp.zeros((Bb, F1), jnp.float32)

    for layer in range(num_layers):
        w_ih = w_refs[2 * layer][...]              # (in_dim, 4H) bf16
        w_hh = w_refs[2 * layer + 1][...]          # (H, 4H)      bf16
        bias = lstm_b_ref[layer]                   # (1, 4H)      f32

        # Layer input, already flattened t-major: (T*Bb, in_dim).
        x_in = x_ref[0] if layer == 0 else hseq_ref[...]

        # Hoisted input projection: one batched MXU call for all timesteps,
        # bias folded in (this work is off the serial h-dependency chain).
        x_proj = jnp.dot(x_in, w_ih,
                         preferred_element_type=jnp.float32) + bias  # (T*Bb,4H)

        is_last = layer == num_layers - 1

        h = jnp.zeros((Bb, H), jnp.float32)
        c = jnp.zeros((Bb, H), jnp.float32)
        for t in range(T):
            gates = x_proj[t * Bb:(t + 1) * Bb] + jnp.dot(
                h.astype(jnp.bfloat16), w_hh,
                preferred_element_type=jnp.float32)           # (Bb, 4H)
            # Gate columns were reordered wrapper-side to [i, f, o, g]:
            # one sigmoid over the first 3H lanes, one tanh over the last H.
            sig = jax.nn.sigmoid(gates[:, :3 * H])
            i_g = sig[:, 0 * H:1 * H]
            f_g = sig[:, 1 * H:2 * H]
            o_g = sig[:, 2 * H:3 * H]
            g_g = jnp.tanh(gates[:, 3 * H:])
            c = f_g * c + i_g * g_g
            h = o_g * jnp.tanh(c)
            if is_last:
                # relu(flattened LSTM output) @ fc1, fused into the recurrence.
                fc1_acc = fc1_acc + jnp.dot(
                    jnp.maximum(h, 0.0).astype(jnp.bfloat16), fc1_w_ref[t],
                    preferred_element_type=jnp.float32)
            else:
                hseq_ref[t * Bb:(t + 1) * Bb, :] = h.astype(jnp.bfloat16)

    h1 = jnp.maximum(fc1_acc + fc1_b_ref[...], 0.0)           # (Bb, F1)
    out = jnp.dot(h1.astype(jnp.bfloat16), fc2_w_ref[...],
                  preferred_element_type=jnp.float32)
    out_ref[...] = out + fc2_b_ref[...]                       # (Bb, Cpad)


# -----------------------------------------------------------------------------
# Wrapper
# -----------------------------------------------------------------------------
def value_net_forward(x, params, *, num_layers, seq_length, hidden_size,
                      num_classes, batch_block=None):
    """x: (B, T, input_size) float32, batch-first like the PyTorch module."""
    B, T, I = x.shape
    assert T == seq_length
    H = hidden_size

    if batch_block is None:
        batch_block = min(B, 8)
    n_blocks = -(-B // batch_block)
    B_pad = n_blocks * batch_block

    # --- activations: pad batch, reorder rows to (block, t-major, feature) ---
    xb = x.astype(jnp.bfloat16)
    if B_pad != B:
        xb = jnp.pad(xb, ((0, B_pad - B), (0, 0), (0, 0)))
    xb = xb.reshape(n_blocks, batch_block, T, I)
    xb = jnp.transpose(xb, (0, 2, 1, 3)).reshape(n_blocks, T * batch_block, I)

    # --- weights: reorder gate rows [i,f,g,o] -> [i,f,o,g], transpose, bf16 ---
    def reorder_gates(w):
        return jnp.concatenate([w[:2 * H], w[3 * H:], w[2 * H:3 * H]], axis=0)

    inputs = [xb]
    in_specs = [pl.BlockSpec((1, T * batch_block, I), lambda k: (k, 0, 0))]

    biases = []
    for layer in range(num_layers):
        w_ih, w_hh, b_ih, b_hh = params["lstm"][layer]
        w_ih_t = reorder_gates(
            jnp.asarray(w_ih, jnp.float32)).T.astype(jnp.bfloat16)   # (in, 4H)
        w_hh_t = reorder_gates(
            jnp.asarray(w_hh, jnp.float32)).T.astype(jnp.bfloat16)   # (H, 4H)
        inputs += [w_ih_t, w_hh_t]
        in_specs += [pl.BlockSpec(w_ih_t.shape, lambda k: (0, 0)),
                     pl.BlockSpec(w_hh_t.shape, lambda k: (0, 0))]
        biases.append(reorder_gates(
            jnp.asarray(b_ih, jnp.float32)
            + jnp.asarray(b_hh, jnp.float32)).reshape(1, 4 * H))
    lstm_b = jnp.stack(biases, axis=0)                 # (L, 1, 4H) f32, one DMA
    inputs.append(lstm_b)
    in_specs.append(pl.BlockSpec(lstm_b.shape, lambda k: (0, 0, 0)))

    F1 = params["fc1_w"].shape[0]                      # 128 in the module
    C_pad = max(128, -(-num_classes // 128) * 128)     # lane-dense output width

    fc1_w = jnp.asarray(params["fc1_w"], jnp.float32).T          # (T*H, F1)
    fc1_w = fc1_w.reshape(T, H, F1).astype(jnp.bfloat16)         # per-t split
    fc1_b = jnp.asarray(params["fc1_b"], jnp.float32).reshape(1, F1)
    fc2_w = jnp.asarray(params["fc2_w"], jnp.float32).T          # (F1, C)
    fc2_w = jnp.pad(fc2_w, ((0, 0), (0, C_pad - num_classes))).astype(jnp.bfloat16)
    fc2_b = jnp.pad(jnp.asarray(params["fc2_b"], jnp.float32),
                    (0, C_pad - num_classes)).reshape(1, C_pad)
    inputs += [fc1_w, fc1_b, fc2_w, fc2_b]
    in_specs += [pl.BlockSpec(fc1_w.shape, lambda k: (0, 0, 0)),
                 pl.BlockSpec(fc1_b.shape, lambda k: (0, 0)),
                 pl.BlockSpec(fc2_w.shape, lambda k: (0, 0)),
                 pl.BlockSpec(fc2_b.shape, lambda k: (0, 0))]

    kernel = functools.partial(_value_net_kernel, num_layers, seq_length,
                               hidden_size, batch_block)

    out_pad = pl.pallas_call(
        kernel,
        out_shape=jax.ShapeDtypeStruct((B_pad, C_pad), jnp.float32),
        grid=(n_blocks,),
        in_specs=in_specs,
        out_specs=pl.BlockSpec((batch_block, C_pad), lambda k: (k, 0)),
        scratch_shapes=[pltpu.VMEM((T * batch_block, H), jnp.bfloat16)],
        compiler_params=pltpu.CompilerParams(
            dimension_semantics=("parallel",),
            vmem_limit_bytes=32 * 1024 * 1024),
    )(*inputs)

    return out_pad[:B, :num_classes]


# -----------------------------------------------------------------------------
# Deterministic parameter construction (synthetic, not a checkpoint load)
# -----------------------------------------------------------------------------
def make_params(key, *, num_classes, input_size, hidden_size, num_layers,
                seq_length):
    params = {"lstm": []}
    scale = 0.1
    for layer in range(num_layers):
        in_dim = input_size if layer == 0 else hidden_size
        key, k1, k2, k3, k4 = jax.random.split(key, 5)
        w_ih = scale * jax.random.normal(k1, (4 * hidden_size, in_dim), jnp.float32)
        w_hh = scale * jax.random.normal(k2, (4 * hidden_size, hidden_size), jnp.float32)
        b_ih = scale * jax.random.normal(k3, (4 * hidden_size,), jnp.float32)
        b_hh = scale * jax.random.normal(k4, (4 * hidden_size,), jnp.float32)
        params["lstm"].append((w_ih, w_hh, b_ih, b_hh))
    key, k1, k2, k3, k4 = jax.random.split(key, 5)
    params["fc1_w"] = scale * jax.random.normal(
        k1, (128, hidden_size * seq_length), jnp.float32)
    params["fc1_b"] = scale * jax.random.normal(k2, (128,), jnp.float32)
    params["fc2_w"] = scale * jax.random.normal(k3, (num_classes, 128), jnp.float32)
    params["fc2_b"] = scale * jax.random.normal(k4, (num_classes,), jnp.float32)
    return params


if __name__ == "__main__":
    # Small shapes consistent with the module's forward pass.
    NUM_CLASSES = 4
    INPUT_SIZE = 8
    HIDDEN_SIZE = 32
    NUM_LAYERS = 2
    SEQ_LENGTH = 8
    BATCH = 2

    key = jax.random.PRNGKey(0)
    key, xk = jax.random.split(key)
    x = jax.random.normal(xk, (BATCH, SEQ_LENGTH, INPUT_SIZE), jnp.float32)

    params = make_params(key, num_classes=NUM_CLASSES, input_size=INPUT_SIZE,
                         hidden_size=HIDDEN_SIZE, num_layers=NUM_LAYERS,
                         seq_length=SEQ_LENGTH)

    out = value_net_forward(x, params, num_layers=NUM_LAYERS,
                            seq_length=SEQ_LENGTH, hidden_size=HIDDEN_SIZE,
                            num_classes=NUM_CLASSES)
    out = jax.block_until_ready(out)
    assert out.shape == (BATCH, NUM_CLASSES), out.shape
    print("KERNEL_OK")
</pallas_src>

<mosaic_0001>
module attributes {stable_mosaic.version = 11 : i64} {
  func.func @_value_net_kernel(%arg0: i32, %arg1: memref<1x16x8xbf16, #tpu.memory_space<vmem>>, %arg2: memref<8x128xbf16, #tpu.memory_space<vmem>>, %arg3: memref<32x128xbf16, #tpu.memory_space<vmem>>, %arg4: memref<32x128xbf16, #tpu.memory_space<vmem>>, %arg5: memref<32x128xbf16, #tpu.memory_space<vmem>>, %arg6: memref<2x1x128xf32, #tpu.memory_space<vmem>>, %arg7: memref<8x32x128xbf16, #tpu.memory_space<vmem>>, %arg8: memref<1x128xf32, #tpu.memory_space<vmem>>, %arg9: memref<128x128xbf16, #tpu.memory_space<vmem>>, %arg10: memref<1x128xf32, #tpu.memory_space<vmem>>, %arg11: memref<2x128xf32, #tpu.memory_space<vmem>>, %arg12: memref<16x32xbf16, #tpu.memory_space<vmem>>) attributes {dimension_semantics = [#tpu.dimension_semantics<parallel>], iteration_bounds = array<i64: 1>, scalar_prefetch = 0 : i64, scratch_operands = 1 : i64, tpu.core_type = #tpu.core_type<tc>, window_params = [{transform_indices = @transform_0, window_bounds = array<i64: 1, 16, 8>}, {pipeline_mode = #tpu.pipeline_mode<synchronous>, transform_indices = @transform_1, window_bounds = array<i64: 8, 128>}, {pipeline_mode = #tpu.pipeline_mode<synchronous>, transform_indices = @transform_2, window_bounds = array<i64: 32, 128>}, {pipeline_mode = #tpu.pipeline_mode<synchronous>, transform_indices = @transform_3, window_bounds = array<i64: 32, 128>}, {pipeline_mode = #tpu.pipeline_mode<synchronous>, transform_indices = @transform_4, window_bounds = array<i64: 32, 128>}, {pipeline_mode = #tpu.pipeline_mode<synchronous>, transform_indices = @transform_5, window_bounds = array<i64: 2, 1, 128>}, {pipeline_mode = #tpu.pipeline_mode<synchronous>, transform_indices = @transform_6, window_bounds = array<i64: 8, 32, 128>}, {pipeline_mode = #tpu.pipeline_mode<synchronous>, transform_indices = @transform_7, window_bounds = array<i64: 1, 128>}, {pipeline_mode = #tpu.pipeline_mode<synchronous>, transform_indices = @transform_8, window_bounds = array<i64: 128, 128>}, {pipeline_mode = #tpu.pipeline_mode<synchronous>, transform_indices = @transform_9, window_bounds = array<i64: 1, 128>}, {transform_indices = @transform_10, window_bounds = array<i64: 2, 128>}]} {
    %cst = arith.constant 0.000000e+00 : f32
    %0 = vector.broadcast %cst : f32 to vector<2x128xf32>
    %c0 = arith.constant 0 : index
    %c0_0 = arith.constant 0 : index
    %1 = vector.load %arg2[%c0, %c0_0] : memref<8x128xbf16, #tpu.memory_space<vmem>>, vector<8x128xbf16>
    %c0_1 = arith.constant 0 : index
    %c0_2 = arith.constant 0 : index
    %2 = vector.load %arg3[%c0_1, %c0_2] : memref<32x128xbf16, #tpu.memory_space<vmem>>, vector<32x128xbf16>
    %c0_3 = arith.constant 0 : index
    %c0_4 = arith.constant 0 : index
    %c0_5 = arith.constant 0 : index
    %3 = vector.load %arg6[%c0_3, %c0_4, %c0_5] : memref<2x1x128xf32, #tpu.memory_space<vmem>>, vector<1x1x128xf32>
    %4 = vector.shape_cast %3 : vector<1x1x128xf32> to vector<1x128xf32>
    %c0_6 = arith.constant 0 : index
    %c0_7 = arith.constant 0 : index
    %c0_8 = arith.constant 0 : index
    %5 = vector.load %arg1[%c0_6, %c0_7, %c0_8] : memref<1x16x8xbf16, #tpu.memory_space<vmem>>, vector<1x16x8xbf16>
    %6 = vector.shape_cast %5 : vector<1x16x8xbf16> to vector<16x8xbf16>
    %cst_9 = arith.constant dense<0.000000e+00> : vector<16x128xf32>
    %7 = tpu.matmul %6, %1, %cst_9 {dimension_numbers = #tpu.dot_dimension_numbers<[1], [0], [0], [1], [0, 0, 1, 1], [], []>} : vector<16x8xbf16>, vector<8x128xbf16>, vector<16x128xf32> -> vector<16x128xf32>
    %8 = vector.broadcast %4 : vector<1x128xf32> to vector<16x128xf32>
    %9 = arith.addf %7, %8 : vector<16x128xf32>
    %cst_10 = arith.constant 0.000000e+00 : f32
    %10 = vector.broadcast %cst_10 : f32 to vector<2x32xf32>
    %cst_11 = arith.constant 0.000000e+00 : f32
    %11 = vector.broadcast %cst_11 : f32 to vector<2x32xf32>
    %12 = vector.extract_strided_slice %9 {offsets = [0, 0], sizes = [2, 128], strides = [1, 1]} : vector<16x128xf32> to vector<2x128xf32>
    %13 = arith.truncf %10 : vector<2x32xf32> to vector<2x32xbf16>
    %cst_12 = arith.constant dense<0.000000e+00> : vector<2x128xf32>
    %14 = tpu.matmul %13, %2, %cst_12 {dimension_numbers = #tpu.dot_dimension_numbers<[1], [0], [0], [1], [0, 0, 1, 1], [], []>} : vector<2x32xbf16>, vector<32x128xbf16>, vector<2x128xf32> -> vector<2x128xf32>
    %15 = arith.addf %12, %14 : vector<2x128xf32>
    %16 = vector.extract_strided_slice %15 {offsets = [0, 0], sizes = [2, 96], strides = [1, 1]} : vector<2x128xf32> to vector<2x96xf32>
    %17 = arith.negf %16 : vector<2x96xf32>
    %18 = math.exp %17 : vector<2x96xf32>
    %cst_13 = arith.constant 1.000000e+00 : f32
    %19 = vector.broadcast %cst_13 : f32 to vector<2x96xf32>
    %20 = arith.addf %19, %18 : vector<2x96xf32>
    %21 = arith.divf %19, %20 : vector<2x96xf32>
    %22 = vector.extract_strided_slice %21 {offsets = [0, 0], sizes = [2, 32], strides = [1, 1]} : vector<2x96xf32> to vector<2x32xf32>
    %23 = vector.extract_strided_slice %21 {offsets = [0, 32], sizes = [2, 32], strides = [1, 1]} : vector<2x96xf32> to vector<2x32xf32>
    %24 = vector.extract_strided_slice %21 {offsets = [0, 64], sizes = [2, 32], strides = [1, 1]} : vector<2x96xf32> to vector<2x32xf32>
    %25 = vector.extract_strided_slice %15 {offsets = [0, 96], sizes = [2, 32], strides = [1, 1]} : vector<2x128xf32> to vector<2x32xf32>
    %26 = math.tanh %25 : vector<2x32xf32>
    %27 = arith.mulf %23, %11 : vector<2x32xf32>
    %28 = arith.mulf %22, %26 : vector<2x32xf32>
    %29 = arith.addf %27, %28 : vector<2x32xf32>
    %30 = math.tanh %29 : vector<2x32xf32>
    %31 = arith.mulf %24, %30 : vector<2x32xf32>
    %32 = arith.truncf %31 : vector<2x32xf32> to vector<2x32xbf16>
    %c0_14 = arith.constant 0 : index
    %c0_15 = arith.constant 0 : index
    %33 = vector.load %arg12[%c0_14, %c0_15] : memref<16x32xbf16, #tpu.memory_space<vmem>>, vector<2x32xbf16>
    tpu.vector_store %arg12[%c0_14, %c0_15], %32 {strides = array<i32>} : memref<16x32xbf16, #tpu.memory_space<vmem>>, vector<2x32xbf16>,
    %34 = vector.extract_strided_slice %9 {offsets = [2, 0], sizes = [2, 128], strides = [1, 1]} : vector<16x128xf32> to vector<2x128xf32>
    %35 = arith.truncf %31 : vector<2x32xf32> to vector<2x32xbf16>
    %cst_16 = arith.constant dense<0.000000e+00> : vector<2x128xf32>
    %36 = tpu.matmul %35, %2, %cst_16 {dimension_numbers = #tpu.dot_dimension_numbers<[1], [0], [0], [1], [0, 0, 1, 1], [], []>} : vector<2x32xbf16>, vector<32x128xbf16>, vector<2x128xf32> -> vector<2x128xf32>
    %37 = arith.addf %34, %36 : vector<2x128xf32>
    %38 = vector.extract_strided_slice %37 {offsets = [0, 0], sizes = [2, 96], strides = [1, 1]} : vector<2x128xf32> to vector<2x96xf32>
    %39 = arith.negf %38 : vector<2x96xf32>
    %40 = math.exp %39 : vector<2x96xf32>
    %cst_17 = arith.constant 1.000000e+00 : f32
    %41 = vector.broadcast %cst_17 : f32 to vector<2x96xf32>
    %42 = arith.addf %41, %40 : vector<2x96xf32>
    %43 = arith.divf %41, %42 : vector<2x96xf32>
    %44 = vector.extract_strided_slice %43 {offsets = [0, 0], sizes = [2, 32], strides = [1, 1]} : vector<2x96xf32> to vector<2x32xf32>
    %45 = vector.extract_strided_slice %43 {offsets = [0, 32], sizes = [2, 32], strides = [1, 1]} : vector<2x96xf32> to vector<2x32xf32>
    %46 = vector.extract_strided_slice %43 {offsets = [0, 64], sizes = [2, 32], strides = [1, 1]} : vector<2x96xf32> to vector<2x32xf32>
    %47 = vector.extract_strided_slice %37 {offsets = [0, 96], sizes = [2, 32], strides = [1, 1]} : vector<2x128xf32> to vector<2x32xf32>
    %48 = math.tanh %47 : vector<2x32xf32>
    %49 = arith.mulf %45, %29 : vector<2x32xf32>
    %50 = arith.mulf %44, %48 : vector<2x32xf32>
    %51 = arith.addf %49, %50 : vector<2x32xf32>
    %52 = math.tanh %51 : vector<2x32xf32>
    %53 = arith.mulf %46, %52 : vector<2x32xf32>
    %54 = arith.truncf %53 : vector<2x32xf32> to vector<2x32xbf16>
    %c2 = arith.constant 2 : index
    %c0_18 = arith.constant 0 : index
    %55 = vector.load %arg12[%c2, %c0_18] : memref<16x32xbf16, #tpu.memory_space<vmem>>, vector<2x32xbf16>
    tpu.vector_store %arg12[%c2, %c0_18], %54 {strides = array<i32>} : memref<16x32xbf16, #tpu.memory_space<vmem>>, vector<2x32xbf16>,
    %56 = vector.extract_strided_slice %9 {offsets = [4, 0], sizes = [2, 128], strides = [1, 1]} : vector<16x128xf32> to vector<2x128xf32>
    %57 = arith.truncf %53 : vector<2x32xf32> to vector<2x32xbf16>
    %cst_19 = arith.constant dense<0.000000e+00> : vector<2x128xf32>
    %58 = tpu.matmul %57, %2, %cst_19 {dimension_numbers = #tpu.dot_dimension_numbers<[1], [0], [0], [1], [0, 0, 1, 1], [], []>} : vector<2x32xbf16>, vector<32x128xbf16>, vector<2x128xf32> -> vector<2x128xf32>
    %59 = arith.addf %56, %58 : vector<2x128xf32>
    %60 = vector.extract_strided_slice %59 {offsets = [0, 0], sizes = [2, 96], strides = [1, 1]} : vector<2x128xf32> to vector<2x96xf32>
    %61 = arith.negf %60 : vector<2x96xf32>
    %62 = math.exp %61 : vector<2x96xf32>
    %cst_20 = arith.constant 1.000000e+00 : f32
    %63 = vector.broadcast %cst_20 : f32 to vector<2x96xf32>
    %64 = arith.addf %63, %62 : vector<2x96xf32>
    %65 = arith.divf %63, %64 : vector<2x96xf32>
    %66 = vector.extract_strided_slice %65 {offsets = [0, 0], sizes = [2, 32], strides = [1, 1]} : vector<2x96xf32> to vector<2x32xf32>
    %67 = vector.extract_strided_slice %65 {offsets = [0, 32], sizes = [2, 32], strides = [1, 1]} : vector<2x96xf32> to vector<2x32xf32>
    %68 = vector.extract_strided_slice %65 {offsets = [0, 64], sizes = [2, 32], strides = [1, 1]} : vector<2x96xf32> to vector<2x32xf32>
    %69 = vector.extract_strided_slice %59 {offsets = [0, 96], sizes = [2, 32], strides = [1, 1]} : vector<2x128xf32> to vector<2x32xf32>
    %70 = math.tanh %69 : vector<2x32xf32>
    %71 = arith.mulf %67, %51 : vector<2x32xf32>
    %72 = arith.mulf %66, %70 : vector<2x32xf32>
    %73 = arith.addf %71, %72 : vector<2x32xf32>
    %74 = math.tanh %73 : vector<2x32xf32>
    %75 = arith.mulf %68, %74 : vector<2x32xf32>
    %76 = arith.truncf %75 : vector<2x32xf32> to vector<2x32xbf16>
    %c4 = arith.constant 4 : index
    %c0_21 = arith.constant 0 : index
    %77 = vector.load %arg12[%c4, %c0_21] : memref<16x32xbf16, #tpu.memory_space<vmem>>, vector<2x32xbf16>
    tpu.vector_store %arg12[%c4, %c0_21], %76 {strides = array<i32>} : memref<16x32xbf16, #tpu.memory_space<vmem>>, vector<2x32xbf16>,
    %78 = vector.extract_strided_slice %9 {offsets = [6, 0], sizes = [2, 128], strides = [1, 1]} : vector<16x128xf32> to vector<2x128xf32>
    %79 = arith.truncf %75 : vector<2x32xf32> to vector<2x32xbf16>
    %cst_22 = arith.constant dense<0.000000e+00> : vector<2x128xf32>
    %80 = tpu.matmul %79, %2, %cst_22 {dimension_numbers = #tpu.dot_dimension_numbers<[1], [0], [0], [1], [0, 0, 1, 1], [], []>} : vector<2x32xbf16>, vector<32x128xbf16>, vector<2x128xf32> -> vector<2x128xf32>
    %81 = arith.addf %78, %80 : vector<2x128xf32>
    %82 = vector.extract_strided_slice %81 {offsets = [0, 0], sizes = [2, 96], strides = [1, 1]} : vector<2x128xf32> to vector<2x96xf32>
    %83 = arith.negf %82 : vector<2x96xf32>
    %84 = math.exp %83 : vector<2x96xf32>
    %cst_23 = arith.constant 1.000000e+00 : f32
    %85 = vector.broadcast %cst_23 : f32 to vector<2x96xf32>
    %86 = arith.addf %85, %84 : vector<2x96xf32>
    %87 = arith.divf %85, %86 : vector<2x96xf32>
    %88 = vector.extract_strided_slice %87 {offsets = [0, 0], sizes = [2, 32], strides = [1, 1]} : vector<2x96xf32> to vector<2x32xf32>
    %89 = vector.extract_strided_slice %87 {offsets = [0, 32], sizes = [2, 32], strides = [1, 1]} : vector<2x96xf32> to vector<2x32xf32>
    %90 = vector.extract_strided_slice %87 {offsets = [0, 64], sizes = [2, 32], strides = [1, 1]} : vector<2x96xf32> to vector<2x32xf32>
    %91 = vector.extract_strided_slice %81 {offsets = [0, 96], sizes = [2, 32], strides = [1, 1]} : vector<2x128xf32> to vector<2x32xf32>
    %92 = math.tanh %91 : vector<2x32xf32>
    %93 = arith.mulf %89, %73 : vector<2x32xf32>
    %94 = arith.mulf %88, %92 : vector<2x32xf32>
    %95 = arith.addf %93, %94 : vector<2x32xf32>
    %96 = math.tanh %95 : vector<2x32xf32>
    %97 = arith.mulf %90, %96 : vector<2x32xf32>
    %98 = arith.truncf %97 : vector<2x32xf32> to vector<2x32xbf16>
    %c6 = arith.constant 6 : index
    %c0_24 = arith.constant 0 : index
    %99 = vector.load %arg12[%c6, %c0_24] : memref<16x32xbf16, #tpu.memory_space<vmem>>, vector<2x32xbf16>
    tpu.vector_store %arg12[%c6, %c0_24], %98 {strides = array<i32>} : memref<16x32xbf16, #tpu.memory_space<vmem>>, vector<2x32xbf16>,
    %100 = vector.extract_strided_slice %9 {offsets = [8, 0], sizes = [2, 128], strides = [1, 1]} : vector<16x128xf32> to vector<2x128xf32>
    %101 = arith.truncf %97 : vector<2x32xf32> to vector<2x32xbf16>
    %cst_25 = arith.constant dense<0.000000e+00> : vector<2x128xf32>
    %102 = tpu.matmul %101, %2, %cst_25 {dimension_numbers = #tpu.dot_dimension_numbers<[1], [0], [0], [1], [0, 0, 1, 1], [], []>} : vector<2x32xbf16>, vector<32x128xbf16>, vector<2x128xf32> -> vector<2x128xf32>
    %103 = arith.addf %100, %102 : vector<2x128xf32>
    %104 = vector.extract_strided_slice %103 {offsets = [0, 0], sizes = [2, 96], strides = [1, 1]} : vector<2x128xf32> to vector<2x96xf32>
    %105 = arith.negf %104 : vector<2x96xf32>
    %106 = math.exp %105 : vector<2x96xf32>
    %cst_26 = arith.constant 1.000000e+00 : f32
    %107 = vector.broadcast %cst_26 : f32 to vector<2x96xf32>
    %108 = arith.addf %107, %106 : vector<2x96xf32>
    %109 = arith.divf %107, %108 : vector<2x96xf32>
    %110 = vector.extract_strided_slice %109 {offsets = [0, 0], sizes = [2, 32], strides = [1, 1]} : vector<2x96xf32> to vector<2x32xf32>
    %111 = vector.extract_strided_slice %109 {offsets = [0, 32], sizes = [2, 32], strides = [1, 1]} : vector<2x96xf32> to vector<2x32xf32>
    %112 = vector.extract_strided_slice %109 {offsets = [0, 64], sizes = [2, 32], strides = [1, 1]} : vector<2x96xf32> to vector<2x32xf32>
    %113 = vector.extract_strided_slice %103 {offsets = [0, 96], sizes = [2, 32], strides = [1, 1]} : vector<2x128xf32> to vector<2x32xf32>
    %114 = math.tanh %113 : vector<2x32xf32>
    %115 = arith.mulf %111, %95 : vector<2x32xf32>
    %116 = arith.mulf %110, %114 : vector<2x32xf32>
    %117 = arith.addf %115, %116 : vector<2x32xf32>
    %118 = math.tanh %117 : vector<2x32xf32>
    %119 = arith.mulf %112, %118 : vector<2x32xf32>
    %120 = arith.truncf %119 : vector<2x32xf32> to vector<2x32xbf16>
    %c8 = arith.constant 8 : index
    %c0_27 = arith.constant 0 : index
    %121 = vector.load %arg12[%c8, %c0_27] : memref<16x32xbf16, #tpu.memory_space<vmem>>, vector<2x32xbf16>
    tpu.vector_store %arg12[%c8, %c0_27], %120 {strides = array<i32>} : memref<16x32xbf16, #tpu.memory_space<vmem>>, vector<2x32xbf16>,
    %122 = vector.extract_strided_slice %9 {offsets = [10, 0], sizes = [2, 128], strides = [1, 1]} : vector<16x128xf32> to vector<2x128xf32>
    %123 = arith.truncf %119 : vector<2x32xf32> to vector<2x32xbf16>
    %cst_28 = arith.constant dense<0.000000e+00> : vector<2x128xf32>
    %124 = tpu.matmul %123, %2, %cst_28 {dimension_numbers = #tpu.dot_dimension_numbers<[1], [0], [0], [1], [0, 0, 1, 1], [], []>} : vector<2x32xbf16>, vector<32x128xbf16>, vector<2x128xf32> -> vector<2x128xf32>
    %125 = arith.addf %122, %124 : vector<2x128xf32>
    %126 = vector.extract_strided_slice %125 {offsets = [0, 0], sizes = [2, 96], strides = [1, 1]} : vector<2x128xf32> to vector<2x96xf32>
    %127 = arith.negf %126 : vector<2x96xf32>
    %128 = math.exp %127 : vector<2x96xf32>
    %cst_29 = arith.constant 1.000000e+00 : f32
    %129 = vector.broadcast %cst_29 : f32 to vector<2x96xf32>
    %130 = arith.addf %129, %128 : vector<2x96xf32>
    %131 = arith.divf %129, %130 : vector<2x96xf32>
    %132 = vector.extract_strided_slice %131 {offsets = [0, 0], sizes = [2, 32], strides = [1, 1]} : vector<2x96xf32> to vector<2x32xf32>
    %133 = vector.extract_strided_slice %131 {offsets = [0, 32], sizes = [2, 32], strides = [1, 1]} : vector<2x96xf32> to vector<2x32xf32>
    %134 = vector.extract_strided_slice %131 {offsets = [0, 64], sizes = [2, 32], strides = [1, 1]} : vector<2x96xf32> to vector<2x32xf32>
    %135 = vector.extract_strided_slice %125 {offsets = [0, 96], sizes = [2, 32], strides = [1, 1]} : vector<2x128xf32> to vector<2x32xf32>
    %136 = math.tanh %135 : vector<2x32xf32>
    %137 = arith.mulf %133, %117 : vector<2x32xf32>
    %138 = arith.mulf %132, %136 : vector<2x32xf32>
    %139 = arith.addf %137, %138 : vector<2x32xf32>
    %140 = math.tanh %139 : vector<2x32xf32>
    %141 = arith.mulf %134, %140 : vector<2x32xf32>
    %142 = arith.truncf %141 : vector<2x32xf32> to vector<2x32xbf16>
    %c10 = arith.constant 10 : index
    %c0_30 = arith.constant 0 : index
    %143 = vector.load %arg12[%c10, %c0_30] : memref<16x32xbf16, #tpu.memory_space<vmem>>, vector<2x32xbf16>
    tpu.vector_store %arg12[%c10, %c0_30], %142 {strides = array<i32>} : memref<16x32xbf16, #tpu.memory_space<vmem>>, vector<2x32xbf16>,
    %144 = vector.extract_strided_slice %9 {offsets = [12, 0], sizes = [2, 128], strides = [1, 1]} : vector<16x128xf32> to vector<2x128xf32>
    %145 = arith.truncf %141 : vector<2x32xf32> to vector<2x32xbf16>
    %cst_31 = arith.constant dense<0.000000e+00> : vector<2x128xf32>
    %146 = tpu.matmul %145, %2, %cst_31 {dimension_numbers = #tpu.dot_dimension_numbers<[1], [0], [0], [1], [0, 0, 1, 1], [], []>} : vector<2x32xbf16>, vector<32x128xbf16>, vector<2x128xf32> -> vector<2x128xf32>
    %147 = arith.addf %144, %146 : vector<2x128xf32>
    %148 = vector.extract_strided_slice %147 {offsets = [0, 0], sizes = [2, 96], strides = [1, 1]} : vector<2x128xf32> to vector<2x96xf32>
    %149 = arith.negf %148 : vector<2x96xf32>
    %150 = math.exp %149 : vector<2x96xf32>
    %cst_32 = arith.constant 1.000000e+00 : f32
    %151 = vector.broadcast %cst_32 : f32 to vector<2x96xf32>
    %152 = arith.addf %151, %150 : vector<2x96xf32>
    %153 = arith.divf %151, %152 : vector<2x96xf32>
    %154 = vector.extract_strided_slice %153 {offsets = [0, 0], sizes = [2, 32], strides = [1, 1]} : vector<2x96xf32> to vector<2x32xf32>
    %155 = vector.extract_strided_slice %153 {offsets = [0, 32], sizes = [2, 32], strides = [1, 1]} : vector<2x96xf32> to vector<2x32xf32>
    %156 = vector.extract_strided_slice %153 {offsets = [0, 64], sizes = [2, 32], strides = [1, 1]} : vector<2x96xf32> to vector<2x32xf32>
    %157 = vector.extract_strided_slice %147 {offsets = [0, 96], sizes = [2, 32], strides = [1, 1]} : vector<2x128xf32> to vector<2x32xf32>
    %158 = math.tanh %157 : vector<2x32xf32>
    %159 = arith.mulf %155, %139 : vector<2x32xf32>
    %160 = arith.mulf %154, %158 : vector<2x32xf32>
    %161 = arith.addf %159, %160 : vector<2x32xf32>
    %162 = math.tanh %161 : vector<2x32xf32>
    %163 = arith.mulf %156, %162 : vector<2x32xf32>
    %164 = arith.truncf %163 : vector<2x32xf32> to vector<2x32xbf16>
    %c12 = arith.constant 12 : index
    %c0_33 = arith.constant 0 : index
    %165 = vector.load %arg12[%c12, %c0_33] : memref<16x32xbf16, #tpu.memory_space<vmem>>, vector<2x32xbf16>
    tpu.vector_store %arg12[%c12, %c0_33], %164 {strides = array<i32>} : memref<16x32xbf16, #tpu.memory_space<vmem>>, vector<2x32xbf16>,
    %166 = vector.extract_strided_slice %9 {offsets = [14, 0], sizes = [2, 128], strides = [1, 1]} : vector<16x128xf32> to vector<2x128xf32>
    %167 = arith.truncf %163 : vector<2x32xf32> to vector<2x32xbf16>
    %cst_34 = arith.constant dense<0.000000e+00> : vector<2x128xf32>
    %168 = tpu.matmul %167, %2, %cst_34 {dimension_numbers = #tpu.dot_dimension_numbers<[1], [0], [0], [1], [0, 0, 1, 1], [], []>} : vector<2x32xbf16>, vector<32x128xbf16>, vector<2x128xf32> -> vector<2x128xf32>
    %169 = arith.addf %166, %168 : vector<2x128xf32>
    %170 = vector.extract_strided_slice %169 {offsets = [0, 0], sizes = [2, 96], strides = [1, 1]} : vector<2x128xf32> to vector<2x96xf32>
    %171 = arith.negf %170 : vector<2x96xf32>
    %172 = math.exp %171 : vector<2x96xf32>
    %cst_35 = arith.constant 1.000000e+00 : f32
    %173 = vector.broadcast %cst_35 : f32 to vector<2x96xf32>
    %174 = arith.addf %173, %172 : vector<2x96xf32>
    %175 = arith.divf %173, %174 : vector<2x96xf32>
    %176 = vector.extract_strided_slice %175 {offsets = [0, 0], sizes = [2, 32], strides = [1, 1]} : vector<2x96xf32> to vector<2x32xf32>
    %177 = vector.extract_strided_slice %175 {offsets = [0, 32], sizes = [2, 32], strides = [1, 1]} : vector<2x96xf32> to vector<2x32xf32>
    %178 = vector.extract_strided_slice %175 {offsets = [0, 64], sizes = [2, 32], strides = [1, 1]} : vector<2x96xf32> to vector<2x32xf32>
    %179 = vector.extract_strided_slice %169 {offsets = [0, 96], sizes = [2, 32], strides = [1, 1]} : vector<2x128xf32> to vector<2x32xf32>
    %180 = math.tanh %179 : vector<2x32xf32>
    %181 = arith.mulf %177, %161 : vector<2x32xf32>
    %182 = arith.mulf %176, %180 : vector<2x32xf32>
    %183 = arith.addf %181, %182 : vector<2x32xf32>
    %184 = math.tanh %183 : vector<2x32xf32>
    %185 = arith.mulf %178, %184 : vector<2x32xf32>
    %186 = arith.truncf %185 : vector<2x32xf32> to vector<2x32xbf16>
    %c14 = arith.constant 14 : index
    %c0_36 = arith.constant 0 : index
    %187 = vector.load %arg12[%c14, %c0_36] : memref<16x32xbf16, #tpu.memory_space<vmem>>, vector<2x32xbf16>
    tpu.vector_store %arg12[%c14, %c0_36], %186 {strides = array<i32>} : memref<16x32xbf16, #tpu.memory_space<vmem>>, vector<2x32xbf16>,
    %c0_37 = arith.constant 0 : index
    %c0_38 = arith.constant 0 : index
    %188 = vector.load %arg4[%c0_37, %c0_38] : memref<32x128xbf16, #tpu.memory_space<vmem>>, vector<32x128xbf16>
    %c0_39 = arith.constant 0 : index
    %c0_40 = arith.constant 0 : index
    %189 = vector.load %arg5[%c0_39, %c0_40] : memref<32x128xbf16, #tpu.memory_space<vmem>>, vector<32x128xbf16>
    %c1 = arith.constant 1 : index
    %c0_41 = arith.constant 0 : index
    %c0_42 = arith.constant 0 : index
    %190 = vector.load %arg6[%c1, %c0_41, %c0_42] : memref<2x1x128xf32, #tpu.memory_space<vmem>>, vector<1x1x128xf32>
    %191 = vector.shape_cast %190 : vector<1x1x128xf32> to vector<1x128xf32>
    %c0_43 = arith.constant 0 : index
    %c0_44 = arith.constant 0 : index
    %192 = vector.load %arg12[%c0_43, %c0_44] : memref<16x32xbf16, #tpu.memory_space<vmem>>, vector<16x32xbf16>
    %cst_45 = arith.constant dense<0.000000e+00> : vector<16x128xf32>
    %193 = tpu.matmul %192, %188, %cst_45 {dimension_numbers = #tpu.dot_dimension_numbers<[1], [0], [0], [1], [0, 0, 1, 1], [], []>} : vector<16x32xbf16>, vector<32x128xbf16>, vector<16x128xf32> -> vector<16x128xf32>
    %194 = vector.broadcast %191 : vector<1x128xf32> to vector<16x128xf32>
    %195 = arith.addf %193, %194 : vector<16x128xf32>
    %cst_46 = arith.constant 0.000000e+00 : f32
    %196 = vector.broadcast %cst_46 : f32 to vector<2x32xf32>
    %cst_47 = arith.constant 0.000000e+00 : f32
    %197 = vector.broadcast %cst_47 : f32 to vector<2x32xf32>
    %198 = vector.extract_strided_slice %195 {offsets = [0, 0], sizes = [2, 128], strides = [1, 1]} : vector<16x128xf32> to vector<2x128xf32>
    %199 = arith.truncf %196 : vector<2x32xf32> to vector<2x32xbf16>
    %cst_48 = arith.constant dense<0.000000e+00> : vector<2x128xf32>
    %200 = tpu.matmul %199, %189, %cst_48 {dimension_numbers = #tpu.dot_dimension_numbers<[1], [0], [0], [1], [0, 0, 1, 1], [], []>} : vector<2x32xbf16>, vector<32x128xbf16>, vector<2x128xf32> -> vector<2x128xf32>
    %201 = arith.addf %198, %200 : vector<2x128xf32>
    %202 = vector.extract_strided_slice %201 {offsets = [0, 0], sizes = [2, 96], strides = [1, 1]} : vector<2x128xf32> to vector<2x96xf32>
    %203 = arith.negf %202 : vector<2x96xf32>
    %204 = math.exp %203 : vector<2x96xf32>
    %cst_49 = arith.constant 1.000000e+00 : f32
    %205 = vector.broadcast %cst_49 : f32 to vector<2x96xf32>
    %206 = arith.addf %205, %204 : vector<2x96xf32>
    %207 = arith.divf %205, %206 : vector<2x96xf32>
    %208 = vector.extract_strided_slice %207 {offsets = [0, 0], sizes = [2, 32], strides = [1, 1]} : vector<2x96xf32> to vector<2x32xf32>
    %209 = vector.extract_strided_slice %207 {offsets = [0, 32], sizes = [2, 32], strides = [1, 1]} : vector<2x96xf32> to vector<2x32xf32>
    %210 = vector.extract_strided_slice %207 {offsets = [0, 64], sizes = [2, 32], strides = [1, 1]} : vector<2x96xf32> to vector<2x32xf32>
    %211 = vector.extract_strided_slice %201 {offsets = [0, 96], sizes = [2, 32], strides = [1, 1]} : vector<2x128xf32> to vector<2x32xf32>
    %212 = math.tanh %211 : vector<2x32xf32>
    %213 = arith.mulf %209, %197 : vector<2x32xf32>
    %214 = arith.mulf %208, %212 : vector<2x32xf32>
    %215 = arith.addf %213, %214 : vector<2x32xf32>
    %216 = math.tanh %215 : vector<2x32xf32>
    %217 = arith.mulf %210, %216 : vector<2x32xf32>
    %cst_50 = arith.constant 0.000000e+00 : f32
    %218 = vector.broadcast %cst_50 : f32 to vector<2x32xf32>
    %219 = arith.maximumf %217, %218 : vector<2x32xf32>
    %220 = arith.truncf %219 : vector<2x32xf32> to vector<2x32xbf16>
    %c0_51 = arith.constant 0 : index
    %c0_52 = arith.constant 0 : index
    %c0_53 = arith.constant 0 : index
    %221 = vector.load %arg7[%c0_51, %c0_52, %c0_53] : memref<8x32x128xbf16, #tpu.memory_space<vmem>>, vector<1x32x128xbf16>
    %222 = vector.shape_cast %221 : vector<1x32x128xbf16> to vector<32x128xbf16>
    %cst_54 = arith.constant dense<0.000000e+00> : vector<2x128xf32>
    %223 = tpu.matmul %220, %222, %cst_54 {dimension_numbers = #tpu.dot_dimension_numbers<[1], [0], [0], [1], [0, 0, 1, 1], [], []>} : vector<2x32xbf16>, vector<32x128xbf16>, vector<2x128xf32> -> vector<2x128xf32>
    %224 = arith.addf %0, %223 : vector<2x128xf32>
    %225 = vector.extract_strided_slice %195 {offsets = [2, 0], sizes = [2, 128], strides = [1, 1]} : vector<16x128xf32> to vector<2x128xf32>
    %226 = arith.truncf %217 : vector<2x32xf32> to vector<2x32xbf16>
    %cst_55 = arith.constant dense<0.000000e+00> : vector<2x128xf32>
    %227 = tpu.matmul %226, %189, %cst_55 {dimension_numbers = #tpu.dot_dimension_numbers<[1], [0], [0], [1], [0, 0, 1, 1], [], []>} : vector<2x32xbf16>, vector<32x128xbf16>, vector<2x128xf32> -> vector<2x128xf32>
    %228 = arith.addf %225, %227 : vector<2x128xf32>
    %229 = vector.extract_strided_slice %228 {offsets = [0, 0], sizes = [2, 96], strides = [1, 1]} : vector<2x128xf32> to vector<2x96xf32>
    %230 = arith.negf %229 : vector<2x96xf32>
    %231 = math.exp %230 : vector<2x96xf32>
    %cst_56 = arith.constant 1.000000e+00 : f32
    %232 = vector.broadcast %cst_56 : f32 to vector<2x96xf32>
    %233 = arith.addf %232, %231 : vector<2x96xf32>
    %234 = arith.divf %232, %233 : vector<2x96xf32>
    %235 = vector.extract_strided_slice %234 {offsets = [0, 0], sizes = [2, 32], strides = [1, 1]} : vector<2x96xf32> to vector<2x32xf32>
    %236 = vector.extract_strided_slice %234 {offsets = [0, 32], sizes = [2, 32], strides = [1, 1]} : vector<2x96xf32> to vector<2x32xf32>
    %237 = vector.extract_strided_slice %234 {offsets = [0, 64], sizes = [2, 32], strides = [1, 1]} : vector<2x96xf32> to vector<2x32xf32>
    %238 = vector.extract_strided_slice %228 {offsets = [0, 96], sizes = [2, 32], strides = [1, 1]} : vector<2x128xf32> to vector<2x32xf32>
    %239 = math.tanh %238 : vector<2x32xf32>
    %240 = arith.mulf %236, %215 : vector<2x32xf32>
    %241 = arith.mulf %235, %239 : vector<2x32xf32>
    %242 = arith.addf %240, %241 : vector<2x32xf32>
    %243 = math.tanh %242 : vector<2x32xf32>
    %244 = arith.mulf %237, %243 : vector<2x32xf32>
    %cst_57 = arith.constant 0.000000e+00 : f32
    %245 = vector.broadcast %cst_57 : f32 to vector<2x32xf32>
    %246 = arith.maximumf %244, %245 : vector<2x32xf32>
    %247 = arith.truncf %246 : vector<2x32xf32> to vector<2x32xbf16>
    %c1_58 = arith.constant 1 : index
    %c0_59 = arith.constant 0 : index
    %c0_60 = arith.constant 0 : index
    %248 = vector.load %arg7[%c1_58, %c0_59, %c0_60] : memref<8x32x128xbf16, #tpu.memory_space<vmem>>, vector<1x32x128xbf16>
    %249 = vector.shape_cast %248 : vector<1x32x128xbf16> to vector<32x128xbf16>
    %cst_61 = arith.constant dense<0.000000e+00> : vector<2x128xf32>
    %250 = tpu.matmul %247, %249, %cst_61 {dimension_numbers = #tpu.dot_dimension_numbers<[1], [0], [0], [1], [0, 0, 1, 1], [], []>} : vector<2x32xbf16>, vector<32x128xbf16>, vector<2x128xf32> -> vector<2x128xf32>
    %251 = arith.addf %224, %250 : vector<2x128xf32>
    %252 = vector.extract_strided_slice %195 {offsets = [4, 0], sizes = [2, 128], strides = [1, 1]} : vector<16x128xf32> to vector<2x128xf32>
    %253 = arith.truncf %244 : vector<2x32xf32> to vector<2x32xbf16>
    %cst_62 = arith.constant dense<0.000000e+00> : vector<2x128xf32>
    %254 = tpu.matmul %253, %189, %cst_62 {dimension_numbers = #tpu.dot_dimension_numbers<[1], [0], [0], [1], [0, 0, 1, 1], [], []>} : vector<2x32xbf16>, vector<32x128xbf16>, vector<2x128xf32> -> vector<2x128xf32>
    %255 = arith.addf %252, %254 : vector<2x128xf32>
    %256 = vector.extract_strided_slice %255 {offsets = [0, 0], sizes = [2, 96], strides = [1, 1]} : vector<2x128xf32> to vector<2x96xf32>
    %257 = arith.negf %256 : vector<2x96xf32>
    %258 = math.exp %257 : vector<2x96xf32>
    %cst_63 = arith.constant 1.000000e+00 : f32
    %259 = vector.broadcast %cst_63 : f32 to vector<2x96xf32>
    %260 = arith.addf %259, %258 : vector<2x96xf32>
    %261 = arith.divf %259, %260 : vector<2x96xf32>
    %262 = vector.extract_strided_slice %261 {offsets = [0, 0], sizes = [2, 32], strides = [1, 1]} : vector<2x96xf32> to vector<2x32xf32>
    %263 = vector.extract_strided_slice %261 {offsets = [0, 32], sizes = [2, 32], strides = [1, 1]} : vector<2x96xf32> to vector<2x32xf32>
    %264 = vector.extract_strided_slice %261 {offsets = [0, 64], sizes = [2, 32], strides = [1, 1]} : vector<2x96xf32> to vector<2x32xf32>
    %265 = vector.extract_strided_slice %255 {offsets = [0, 96], sizes = [2, 32], strides = [1, 1]} : vector<2x128xf32> to vector<2x32xf32>
    %266 = math.tanh %265 : vector<2x32xf32>
    %267 = arith.mulf %263, %242 : vector<2x32xf32>
    %268 = arith.mulf %262, %266 : vector<2x32xf32>
    %269 = arith.addf %267, %268 : vector<2x32xf32>
    %270 = math.tanh %269 : vector<2x32xf32>
    %271 = arith.mulf %264, %270 : vector<2x32xf32>
    %cst_64 = arith.constant 0.000000e+00 : f32
    %272 = vector.broadcast %cst_64 : f32 to vector<2x32xf32>
    %273 = arith.maximumf %271, %272 : vector<2x32xf32>
    %274 = arith.truncf %273 : vector<2x32xf32> to vector<2x32xbf16>
    %c2_65 = arith.constant 2 : index
    %c0_66 = arith.constant 0 : index
    %c0_67 = arith.constant 0 : index
    %275 = vector.load %arg7[%c2_65, %c0_66, %c0_67] : memref<8x32x128xbf16, #tpu.memory_space<vmem>>, vector<1x32x128xbf16>
    %276 = vector.shape_cast %275 : vector<1x32x128xbf16> to vector<32x128xbf16>
    %cst_68 = arith.constant dense<0.000000e+00> : vector<2x128xf32>
    %277 = tpu.matmul %274, %276, %cst_68 {dimension_numbers = #tpu.dot_dimension_numbers<[1], [0], [0], [1], [0, 0, 1, 1], [], []>} : vector<2x32xbf16>, vector<32x128xbf16>, vector<2x128xf32> -> vector<2x128xf32>
    %278 = arith.addf %251, %277 : vector<2x128xf32>
    %279 = vector.extract_strided_slice %195 {offsets = [6, 0], sizes = [2, 128], strides = [1, 1]} : vector<16x128xf32> to vector<2x128xf32>
    %280 = arith.truncf %271 : vector<2x32xf32> to vector<2x32xbf16>
    %cst_69 = arith.constant dense<0.000000e+00> : vector<2x128xf32>
    %281 = tpu.matmul %280, %189, %cst_69 {dimension_numbers = #tpu.dot_dimension_numbers<[1], [0], [0], [1], [0, 0, 1, 1], [], []>} : vector<2x32xbf16>, vector<32x128xbf16>, vector<2x128xf32> -> vector<2x128xf32>
    %282 = arith.addf %279, %281 : vector<2x128xf32>
    %283 = vector.extract_strided_slice %282 {offsets = [0, 0], sizes = [2, 96], strides = [1, 1]} : vector<2x128xf32> to vector<2x96xf32>
    %284 = arith.negf %283 : vector<2x96xf32>
    %285 = math.exp %284 : vector<2x96xf32>
    %cst_70 = arith.constant 1.000000e+00 : f32
    %286 = vector.broadcast %cst_70 : f32 to vector<2x96xf32>
    %287 = arith.addf %286, %285 : vector<2x96xf32>
    %288 = arith.divf %286, %287 : vector<2x96xf32>
    %289 = vector.extract_strided_slice %288 {offsets = [0, 0], sizes = [2, 32], strides = [1, 1]} : vector<2x96xf32> to vector<2x32xf32>
    %290 = vector.extract_strided_slice %288 {offsets = [0, 32], sizes = [2, 32], strides = [1, 1]} : vector<2x96xf32> to vector<2x32xf32>
    %291 = vector.extract_strided_slice %288 {offsets = [0, 64], sizes = [2, 32], strides = [1, 1]} : vector<2x96xf32> to vector<2x32xf32>
    %292 = vector.extract_strided_slice %282 {offsets = [0, 96], sizes = [2, 32], strides = [1, 1]} : vector<2x128xf32> to vector<2x32xf32>
    %293 = math.tanh %292 : vector<2x32xf32>
    %294 = arith.mulf %290, %269 : vector<2x32xf32>
    %295 = arith.mulf %289, %293 : vector<2x32xf32>
    %296 = arith.addf %294, %295 : vector<2x32xf32>
    %297 = math.tanh %296 : vector<2x32xf32>
    %298 = arith.mulf %291, %297 : vector<2x32xf32>
    %cst_71 = arith.constant 0.000000e+00 : f32
    %299 = vector.broadcast %cst_71 : f32 to vector<2x32xf32>
    %300 = arith.maximumf %298, %299 : vector<2x32xf32>
    %301 = arith.truncf %300 : vector<2x32xf32> to vector<2x32xbf16>
    %c3 = arith.constant 3 : index
    %c0_72 = arith.constant 0 : index
    %c0_73 = arith.constant 0 : index
    %302 = vector.load %arg7[%c3, %c0_72, %c0_73] : memref<8x32x128xbf16, #tpu.memory_space<vmem>>, vector<1x32x128xbf16>
    %303 = vector.shape_cast %302 : vector<1x32x128xbf16> to vector<32x128xbf16>
    %cst_74 = arith.constant dense<0.000000e+00> : vector<2x128xf32>
    %304 = tpu.matmul %301, %303, %cst_74 {dimension_numbers = #tpu.dot_dimension_numbers<[1], [0], [0], [1], [0, 0, 1, 1], [], []>} : vector<2x32xbf16>, vector<32x128xbf16>, vector<2x128xf32> -> vector<2x128xf32>
    %305 = arith.addf %278, %304 : vector<2x128xf32>
    %306 = vector.extract_strided_slice %195 {offsets = [8, 0], sizes = [2, 128], strides = [1, 1]} : vector<16x128xf32> to vector<2x128xf32>
    %307 = arith.truncf %298 : vector<2x32xf32> to vector<2x32xbf16>
    %cst_75 = arith.constant dense<0.000000e+00> : vector<2x128xf32>
    %308 = tpu.matmul %307, %189, %cst_75 {dimension_numbers = #tpu.dot_dimension_numbers<[1], [0], [0], [1], [0, 0, 1, 1], [], []>} : vector<2x32xbf16>, vector<32x128xbf16>, vector<2x128xf32> -> vector<2x128xf32>
    %309 = arith.addf %306, %308 : vector<2x128xf32>
    %310 = vector.extract_strided_slice %309 {offsets = [0, 0], sizes = [2, 96], strides = [1, 1]} : vector<2x128xf32> to vector<2x96xf32>
    %311 = arith.negf %310 : vector<2x96xf32>
    %312 = math.exp %311 : vector<2x96xf32>
    %cst_76 = arith.constant 1.000000e+00 : f32
    %313 = vector.broadcast %cst_76 : f32 to vector<2x96xf32>
    %314 = arith.addf %313, %312 : vector<2x96xf32>
    %315 = arith.divf %313, %314 : vector<2x96xf32>
    %316 = vector.extract_strided_slice %315 {offsets = [0, 0], sizes = [2, 32], strides = [1, 1]} : vector<2x96xf32> to vector<2x32xf32>
    %317 = vector.extract_strided_slice %315 {offsets = [0, 32], sizes = [2, 32], strides = [1, 1]} : vector<2x96xf32> to vector<2x32xf32>
    %318 = vector.extract_strided_slice %315 {offsets = [0, 64], sizes = [2, 32], strides = [1, 1]} : vector<2x96xf32> to vector<2x32xf32>
    %319 = vector.extract_strided_slice %309 {offsets = [0, 96], sizes = [2, 32], strides = [1, 1]} : vector<2x128xf32> to vector<2x32xf32>
    %320 = math.tanh %319 : vector<2x32xf32>
    %321 = arith.mulf %317, %296 : vector<2x32xf32>
    %322 = arith.mulf %316, %320 : vector<2x32xf32>
    %323 = arith.addf %321, %322 : vector<2x32xf32>
    %324 = math.tanh %323 : vector<2x32xf32>
    %325 = arith.mulf %318, %324 : vector<2x32xf32>
    %cst_77 = arith.constant 0.000000e+00 : f32
    %326 = vector.broadcast %cst_77 : f32 to vector<2x32xf32>
    %327 = arith.maximumf %325, %326 : vector<2x32xf32>
    %328 = arith.truncf %327 : vector<2x32xf32> to vector<2x32xbf16>
    %c4_78 = arith.constant 4 : index
    %c0_79 = arith.constant 0 : index
    %c0_80 = arith.constant 0 : index
    %329 = vector.load %arg7[%c4_78, %c0_79, %c0_80] : memref<8x32x128xbf16, #tpu.memory_space<vmem>>, vector<1x32x128xbf16>
    %330 = vector.shape_cast %329 : vector<1x32x128xbf16> to vector<32x128xbf16>
    %cst_81 = arith.constant dense<0.000000e+00> : vector<2x128xf32>
    %331 = tpu.matmul %328, %330, %cst_81 {dimension_numbers = #tpu.dot_dimension_numbers<[1], [0], [0], [1], [0, 0, 1, 1], [], []>} : vector<2x32xbf16>, vector<32x128xbf16>, vector<2x128xf32> -> vector<2x128xf32>
    %332 = arith.addf %305, %331 : vector<2x128xf32>
    %333 = vector.extract_strided_slice %195 {offsets = [10, 0], sizes = [2, 128], strides = [1, 1]} : vector<16x128xf32> to vector<2x128xf32>
    %334 = arith.truncf %325 : vector<2x32xf32> to vector<2x32xbf16>
    %cst_82 = arith.constant dense<0.000000e+00> : vector<2x128xf32>
    %335 = tpu.matmul %334, %189, %cst_82 {dimension_numbers = #tpu.dot_dimension_numbers<[1], [0], [0], [1], [0, 0, 1, 1], [], []>} : vector<2x32xbf16>, vector<32x128xbf16>, vector<2x128xf32> -> vector<2x128xf32>
    %336 = arith.addf %333, %335 : vector<2x128xf32>
    %337 = vector.extract_strided_slice %336 {offsets = [0, 0], sizes = [2, 96], strides = [1, 1]} : vector<2x128xf32> to vector<2x96xf32>
    %338 = arith.negf %337 : vector<2x96xf32>
    %339 = math.exp %338 : vector<2x96xf32>
    %cst_83 = arith.constant 1.000000e+00 : f32
    %340 = vector.broadcast %cst_83 : f32 to vector<2x96xf32>
    %341 = arith.addf %340, %339 : vector<2x96xf32>
    %342 = arith.divf %340, %341 : vector<2x96xf32>
    %343 = vector.extract_strided_slice %342 {offsets = [0, 0], sizes = [2, 32], strides = [1, 1]} : vector<2x96xf32> to vector<2x32xf32>
    %344 = vector.extract_strided_slice %342 {offsets = [0, 32], sizes = [2, 32], strides = [1, 1]} : vector<2x96xf32> to vector<2x32xf32>
    %345 = vector.extract_strided_slice %342 {offsets = [0, 64], sizes = [2, 32], strides = [1, 1]} : vector<2x96xf32> to vector<2x32xf32>
    %346 = vector.extract_strided_slice %336 {offsets = [0, 96], sizes = [2, 32], strides = [1, 1]} : vector<2x128xf32> to vector<2x32xf32>
    %347 = math.tanh %346 : vector<2x32xf32>
    %348 = arith.mulf %344, %323 : vector<2x32xf32>
    %349 = arith.mulf %343, %347 : vector<2x32xf32>
    %350 = arith.addf %348, %349 : vector<2x32xf32>
    %351 = math.tanh %350 : vector<2x32xf32>
    %352 = arith.mulf %345, %351 : vector<2x32xf32>
    %cst_84 = arith.constant 0.000000e+00 : f32
    %353 = vector.broadcast %cst_84 : f32 to vector<2x32xf32>
    %354 = arith.maximumf %352, %353 : vector<2x32xf32>
    %355 = arith.truncf %354 : vector<2x32xf32> to vector<2x32xbf16>
    %c5 = arith.constant 5 : index
    %c0_85 = arith.constant 0 : index
    %c0_86 = arith.constant 0 : index
    %356 = vector.load %arg7[%c5, %c0_85, %c0_86] : memref<8x32x128xbf16, #tpu.memory_space<vmem>>, vector<1x32x128xbf16>
    %357 = vector.shape_cast %356 : vector<1x32x128xbf16> to vector<32x128xbf16>
    %cst_87 = arith.constant dense<0.000000e+00> : vector<2x128xf32>
    %358 = tpu.matmul %355, %357, %cst_87 {dimension_numbers = #tpu.dot_dimension_numbers<[1], [0], [0], [1], [0, 0, 1, 1], [], []>} : vector<2x32xbf16>, vector<32x128xbf16>, vector<2x128xf32> -> vector<2x128xf32>
    %359 = arith.addf %332, %358 : vector<2x128xf32>
    %360 = vector.extract_strided_slice %195 {offsets = [12, 0], sizes = [2, 128], strides = [1, 1]} : vector<16x128xf32> to vector<2x128xf32>
    %361 = arith.truncf %352 : vector<2x32xf32> to vector<2x32xbf16>
    %cst_88 = arith.constant dense<0.000000e+00> : vector<2x128xf32>
    %362 = tpu.matmul %361, %189, %cst_88 {dimension_numbers = #tpu.dot_dimension_numbers<[1], [0], [0], [1], [0, 0, 1, 1], [], []>} : vector<2x32xbf16>, vector<32x128xbf16>, vector<2x128xf32> -> vector<2x128xf32>
    %363 = arith.addf %360, %362 : vector<2x128xf32>
    %364 = vector.extract_strided_slice %363 {offsets = [0, 0], sizes = [2, 96], strides = [1, 1]} : vector<2x128xf32> to vector<2x96xf32>
    %365 = arith.negf %364 : vector<2x96xf32>
    %366 = math.exp %365 : vector<2x96xf32>
    %cst_89 = arith.constant 1.000000e+00 : f32
    %367 = vector.broadcast %cst_89 : f32 to vector<2x96xf32>
    %368 = arith.addf %367, %366 : vector<2x96xf32>
    %369 = arith.divf %367, %368 : vector<2x96xf32>
    %370 = vector.extract_strided_slice %369 {offsets = [0, 0], sizes = [2, 32], strides = [1, 1]} : vector<2x96xf32> to vector<2x32xf32>
    %371 = vector.extract_strided_slice %369 {offsets = [0, 32], sizes = [2, 32], strides = [1, 1]} : vector<2x96xf32> to vector<2x32xf32>
    %372 = vector.extract_strided_slice %369 {offsets = [0, 64], sizes = [2, 32], strides = [1, 1]} : vector<2x96xf32> to vector<2x32xf32>
    %373 = vector.extract_strided_slice %363 {offsets = [0, 96], sizes = [2, 32], strides = [1, 1]} : vector<2x128xf32> to vector<2x32xf32>
    %374 = math.tanh %373 : vector<2x32xf32>
    %375 = arith.mulf %371, %350 : vector<2x32xf32>
    %376 = arith.mulf %370, %374 : vector<2x32xf32>
    %377 = arith.addf %375, %376 : vector<2x32xf32>
    %378 = math.tanh %377 : vector<2x32xf32>
    %379 = arith.mulf %372, %378 : vector<2x32xf32>
    %cst_90 = arith.constant 0.000000e+00 : f32
    %380 = vector.broadcast %cst_90 : f32 to vector<2x32xf32>
    %381 = arith.maximumf %379, %380 : vector<2x32xf32>
    %382 = arith.truncf %381 : vector<2x32xf32> to vector<2x32xbf16>
    %c6_91 = arith.constant 6 : index
    %c0_92 = arith.constant 0 : index
    %c0_93 = arith.constant 0 : index
    %383 = vector.load %arg7[%c6_91, %c0_92, %c0_93] : memref<8x32x128xbf16, #tpu.memory_space<vmem>>, vector<1x32x128xbf16>
    %384 = vector.shape_cast %383 : vector<1x32x128xbf16> to vector<32x128xbf16>
    %cst_94 = arith.constant dense<0.000000e+00> : vector<2x128xf32>
    %385 = tpu.matmul %382, %384, %cst_94 {dimension_numbers = #tpu.dot_dimension_numbers<[1], [0], [0], [1], [0, 0, 1, 1], [], []>} : vector<2x32xbf16>, vector<32x128xbf16>, vector<2x128xf32> -> vector<2x128xf32>
    %386 = arith.addf %359, %385 : vector<2x128xf32>
    %387 = vector.extract_strided_slice %195 {offsets = [14, 0], sizes = [2, 128], strides = [1, 1]} : vector<16x128xf32> to vector<2x128xf32>
    %388 = arith.truncf %379 : vector<2x32xf32> to vector<2x32xbf16>
    %cst_95 = arith.constant dense<0.000000e+00> : vector<2x128xf32>
    %389 = tpu.matmul %388, %189, %cst_95 {dimension_numbers = #tpu.dot_dimension_numbers<[1], [0], [0], [1], [0, 0, 1, 1], [], []>} : vector<2x32xbf16>, vector<32x128xbf16>, vector<2x128xf32> -> vector<2x128xf32>
    %390 = arith.addf %387, %389 : vector<2x128xf32>
    %391 = vector.extract_strided_slice %390 {offsets = [0, 0], sizes = [2, 96], strides = [1, 1]} : vector<2x128xf32> to vector<2x96xf32>
    %392 = arith.negf %391 : vector<2x96xf32>
    %393 = math.exp %392 : vector<2x96xf32>
    %cst_96 = arith.constant 1.000000e+00 : f32
    %394 = vector.broadcast %cst_96 : f32 to vector<2x96xf32>
    %395 = arith.addf %394, %393 : vector<2x96xf32>
    %396 = arith.divf %394, %395 : vector<2x96xf32>
    %397 = vector.extract_strided_slice %396 {offsets = [0, 0], sizes = [2, 32], strides = [1, 1]} : vector<2x96xf32> to vector<2x32xf32>
    %398 = vector.extract_strided_slice %396 {offsets = [0, 32], sizes = [2, 32], strides = [1, 1]} : vector<2x96xf32> to vector<2x32xf32>
    %399 = vector.extract_strided_slice %396 {offsets = [0, 64], sizes = [2, 32], strides = [1, 1]} : vector<2x96xf32> to vector<2x32xf32>
    %400 = vector.extract_strided_slice %390 {offsets = [0, 96], sizes = [2, 32], strides = [1, 1]} : vector<2x128xf32> to vector<2x32xf32>
    %401 = math.tanh %400 : vector<2x32xf32>
    %402 = arith.mulf %398, %377 : vector<2x32xf32>
    %403 = arith.mulf %397, %401 : vector<2x32xf32>
    %404 = arith.addf %402, %403 : vector<2x32xf32>
    %405 = math.tanh %404 : vector<2x32xf32>
    %406 = arith.mulf %399, %405 : vector<2x32xf32>
    %cst_97 = arith.constant 0.000000e+00 : f32
    %407 = vector.broadcast %cst_97 : f32 to vector<2x32xf32>
    %408 = arith.maximumf %406, %407 : vector<2x32xf32>
    %409 = arith.truncf %408 : vector<2x32xf32> to vector<2x32xbf16>
    %c7 = arith.constant 7 : index
    %c0_98 = arith.constant 0 : index
    %c0_99 = arith.constant 0 : index
    %410 = vector.load %arg7[%c7, %c0_98, %c0_99] : memref<8x32x128xbf16, #tpu.memory_space<vmem>>, vector<1x32x128xbf16>
    %411 = vector.shape_cast %410 : vector<1x32x128xbf16> to vector<32x128xbf16>
    %cst_100 = arith.constant dense<0.000000e+00> : vector<2x128xf32>
    %412 = tpu.matmul %409, %411, %cst_100 {dimension_numbers = #tpu.dot_dimension_numbers<[1], [0], [0], [1], [0, 0, 1, 1], [], []>} : vector<2x32xbf16>, vector<32x128xbf16>, vector<2x128xf32> -> vector<2x128xf32>
    %413 = arith.addf %386, %412 : vector<2x128xf32>
    %c0_101 = arith.constant 0 : index
    %c0_102 = arith.constant 0 : index
    %414 = vector.load %arg8[%c0_101, %c0_102] : memref<1x128xf32, #tpu.memory_space<vmem>>, vector<1x128xf32>
    %415 = vector.broadcast %414 : vector<1x128xf32> to vector<2x128xf32>
    %416 = arith.addf %413, %415 : vector<2x128xf32>
    %cst_103 = arith.constant 0.000000e+00 : f32
    %417 = vector.broadcast %cst_103 : f32 to vector<2x128xf32>
    %418 = arith.maximumf %416, %417 : vector<2x128xf32>
    %419 = arith.truncf %418 : vector<2x128xf32> to vector<2x128xbf16>
    %c0_104 = arith.constant 0 : index
    %c0_105 = arith.constant 0 : index
    %420 = vector.load %arg9[%c0_104, %c0_105] : memref<128x128xbf16, #tpu.memory_space<vmem>>, vector<128x128xbf16>
    %cst_106 = arith.constant dense<0.000000e+00> : vector<2x128xf32>
    %421 = tpu.matmul %419, %420, %cst_106 {dimension_numbers = #tpu.dot_dimension_numbers<[1], [0], [0], [1], [0, 0, 1, 1], [], []>} : vector<2x128xbf16>, vector<128x128xbf16>, vector<2x128xf32> -> vector<2x128xf32>
    %c0_107 = arith.constant 0 : index
    %c0_108 = arith.constant 0 : index
    %422 = vector.load %arg10[%c0_107, %c0_108] : memref<1x128xf32, #tpu.memory_space<vmem>>, vector<1x128xf32>
    %423 = vector.broadcast %422 : vector<1x128xf32> to vector<2x128xf32>
    %424 = arith.addf %421, %423 : vector<2x128xf32>
    %c0_109 = arith.constant 0 : index
    %c0_110 = arith.constant 0 : index
    %425 = vector.load %arg11[%c0_109, %c0_110] : memref<2x128xf32, #tpu.memory_space<vmem>>, vector<2x128xf32>
    tpu.vector_store %arg11[%c0_109, %c0_110], %424 {strides = array<i32>} : memref<2x128xf32, #tpu.memory_space<vmem>>, vector<2x128xf32>,
    return
  }
  func.func @transform_0(%arg0: i32) -> (i32, i32, i32) {
    %c0_i32 = arith.constant 0 : i32
    %c0_i32_0 = arith.constant 0 : i32
    %c0_i32_1 = arith.constant 0 : i32
    return %arg0, %c0_i32, %c0_i32_0 : i32, i32, i32
  }
  func.func @transform_1(%arg0: i32) -> (i32, i32) {
    %c0_i32 = arith.constant 0 : i32
    %c0_i32_0 = arith.constant 0 : i32
    %c0_i32_1 = arith.constant 0 : i32
    return %c0_i32, %c0_i32_0 : i32, i32
  }
  func.func @transform_2(%arg0: i32) -> (i32, i32) {
    %c0_i32 = arith.constant 0 : i32
    %c0_i32_0 = arith.constant 0 : i32
    %c0_i32_1 = arith.constant 0 : i32
    return %c0_i32, %c0_i32_0 : i32, i32
  }
  func.func @transform_3(%arg0: i32) -> (i32, i32) {
    %c0_i32 = arith.constant 0 : i32
    %c0_i32_0 = arith.constant 0 : i32
    %c0_i32_1 = arith.constant 0 : i32
    return %c0_i32, %c0_i32_0 : i32, i32
  }
  func.func @transform_4(%arg0: i32) -> (i32, i32) {
    %c0_i32 = arith.constant 0 : i32
    %c0_i32_0 = arith.constant 0 : i32
    %c0_i32_1 = arith.constant 0 : i32
    return %c0_i32, %c0_i32_0 : i32, i32
  }
  func.func @transform_5(%arg0: i32) -> (i32, i32, i32) {
    %c0_i32 = arith.constant 0 : i32
    %c0_i32_0 = arith.constant 0 : i32
    %c0_i32_1 = arith.constant 0 : i32
    %c0_i32_2 = arith.constant 0 : i32
    return %c0_i32, %c0_i32_0, %c0_i32_1 : i32, i32, i32
  }
  func.func @transform_6(%arg0: i32) -> (i32, i32, i32) {
    %c0_i32 = arith.constant 0 : i32
    %c0_i32_0 = arith.constant 0 : i32
    %c0_i32_1 = arith.constant 0 : i32
    %c0_i32_2 = arith.constant 0 : i32
    return %c0_i32, %c0_i32_0, %c0_i32_1 : i32, i32, i32
  }
  func.func @transform_7(%arg0: i32) -> (i32, i32) {
    %c0_i32 = arith.constant 0 : i32
    %c0_i32_0 = arith.constant 0 : i32
    %c0_i32_1 = arith.constant 0 : i32
    return %c0_i32, %c0_i32_0 : i32, i32
  }
  func.func @transform_8(%arg0: i32) -> (i32, i32) {
    %c0_i32 = arith.constant 0 : i32
    %c0_i32_0 = arith.constant 0 : i32
    %c0_i32_1 = arith.constant 0 : i32
    return %c0_i32, %c0_i32_0 : i32, i32
  }
  func.func @transform_9(%arg0: i32) -> (i32, i32) {
    %c0_i32 = arith.constant 0 : i32
    %c0_i32_0 = arith.constant 0 : i32
    %c0_i32_1 = arith.constant 0 : i32
    return %c0_i32, %c0_i32_0 : i32, i32
  }
  func.func @transform_10(%arg0: i32) -> (i32, i32) {
    %c0_i32 = arith.constant 0 : i32
    %c0_i32_0 = arith.constant 0 : i32
    return %arg0, %c0_i32 : i32, i32
  }
}

</mosaic_0001>

<llo_original>
// kernel: tpu_custom_call.1
$region0: #{tpu_custom_call.1}
  #allocation0 [shape = 'u32[]', space=smem, size = 0x4, offset = 0x4, fixed_abs, tag = 'smem constant byte address 0x4 - core index']
  #allocation1 [shape = 'u32[144,128]{1,0:T(1,128)}', space=vmem, size = 0x12000, scoped, tag = 'internal scratch']
  #allocation2 [shape = 'bf16[16,32]{1,0:T(16,128)(2,1)}', space=vmem, size = 0x1000, scoped, tag = 'scratch operand']
  %s0 = inlined_call_operand.vmem [shape: bf16[1,16,8], index: 0, kind: input, shape index: {}]
  %s1 = inlined_call_operand.hbm [shape: bf16[8,128], index: 1, kind: input, shape index: {}]
  %s2 = inlined_call_operand.vmem [shape: bf16[32,128], index: 2, kind: input, shape index: {}]
  %s3 = inlined_call_operand.hbm [shape: bf16[32,128], index: 3, kind: input, shape index: {}]
  %s4 = inlined_call_operand.hbm [shape: bf16[32,128], index: 4, kind: input, shape index: {}]
  %s5 = inlined_call_operand.vmem [shape: f32[2,1,128], index: 5, kind: input, shape index: {}]
  %s6 = inlined_call_operand.hbm [shape: bf16[8,32,128], index: 6, kind: input, shape index: {}]
  %s7 = inlined_call_operand.vmem [shape: f32[1,128], index: 7, kind: input, shape index: {}]
  %s8 = inlined_call_operand.hbm [shape: bf16[128,128], index: 8, kind: input, shape index: {}]
  %s9 = inlined_call_operand.vmem [shape: f32[1,128], index: 9, kind: input, shape index: {}]
  %s10 = inlined_call_operand.hbm [shape: f32[2,128], index: 10, kind: output, shape index: {}]
  %s11 = sld [smem:[#allocation0]]
  $region70: #{tpu_custom_call.1} parent=0
    _
  %s13 = ssub.s32 1, %s11
  %s14 = scalar_select 0, %s13, %s11
  $region1: #{tpu_custom_call.1} parent=0
    #allocation3 [shape = 'u8[2048]{0}', space=vmem, size = 0x800, scoped, tag = 'input window, operand 1, single buffered']
    #allocation4 [shape = 's32[1]{0}', space=sflag, size = 0x4, scoped, tag = 'scoped memory for tpu_custom_call.1']
    #allocation5 [shape = 's32[1]{0}', space=sflag, size = 0x4, scoped, tag = 'scoped memory for tpu_custom_call.1']
    #allocation6 [shape = 'u8[8192]{0}', space=vmem, size = 0x2000, scoped, tag = 'input window, operand 3, single buffered']
    #allocation7 [shape = 's32[1]{0}', space=sflag, size = 0x4, scoped, tag = 'scoped memory for tpu_custom_call.1']
    #allocation8 [shape = 'u8[8192]{0}', space=vmem, size = 0x2000, scoped, tag = 'input window, operand 4, single buffered']
    #allocation9 [shape = 'u8[65536]{0}', space=vmem, size = 0x10000, scoped, tag = 'input window, operand 6, single buffered']
    #allocation10 [shape = 's32[1]{0}', space=sflag, size = 0x4, scoped, tag = 'scoped memory for tpu_custom_call.1']
    #allocation11 [shape = 'u8[32768]{0}', space=vmem, size = 0x8000, scoped, tag = 'input window, operand 8, single buffered']
    #allocation12 [shape = 'u8[1024]{0}', space=vmem, size = 0x400, scoped, tag = 'output window, operand 0, single buffered']
    %15 = vsyncpa [#allocation4], 0
    %16 = vsyncpa [#allocation7], 0
    %17 = vsyncpa [#allocation10], 0
    %18 = vsyncpa [#allocation5], 0
    // Predicated region
    $region2: #{tpu_custom_call.1} parent=1 // pred_check
      _
    $region3: #{tpu_custom_call.1} parent=1 // pred_check_branch
      %20 = sbr.rel (0) target = $region5
    $region4: #{tpu_custom_call.1} parent=1 // pred_region
      _
    $region5: #{tpu_custom_call.1} parent=1 // pred_fallthru
      _
    // Predicated region
    $region6: #{tpu_custom_call.1} parent=1 // pred_check
      _
    $region7: #{tpu_custom_call.1} parent=1 // pred_check_branch
      %22 = sbr.rel (0) target = $region9
    $region8: #{tpu_custom_call.1} parent=1 // pred_region
      %s24 = ssub.s32 64, 64
      %25 = vsyncadd [#allocation4], %s24
      %s27 = sshll.u32 [#allocation3], 4
      %s28 = int_to_ptr.vmem [resolvable:$true] %s27
      %30 = dma.hbm_to_vmem [thread:$0]  %s1, 64, %s28, [#allocation4]
    $region9: #{tpu_custom_call.1} parent=1 // pred_fallthru
      _
    // Predicated region
    $region10: #{tpu_custom_call.1} parent=1 // pred_check
      _
    $region11: #{tpu_custom_call.1} parent=1 // pred_check_branch
      %32 = sbr.rel (0) target = $region13
    $region12: #{tpu_custom_call.1} parent=1 // pred_region
      _
    $region13: #{tpu_custom_call.1} parent=1 // pred_fallthru
      _
    // Predicated region
    $region14: #{tpu_custom_call.1} parent=1 // pred_check
      _
    $region15: #{tpu_custom_call.1} parent=1 // pred_check_branch
      %34 = sbr.rel (0) target = $region17
    $region16: #{tpu_custom_call.1} parent=1 // pred_region
      %s36 = ssub.s32 256, 256
      %37 = vsyncadd [#allocation7], %s36
      %s38 = sshll.u32 [#allocation6], 4
      %s39 = int_to_ptr.vmem [resolvable:$true] %s38
      %44 = dma.hbm_to_vmem [thread:$0]  %s3, 256, %s39, [#allocation7], 64, 64, 4
    $region17: #{tpu_custom_call.1} parent=1 // pred_fallthru
      _
    // Predicated region
    $region18: #{tpu_custom_call.1} parent=1 // pred_check
      _
    $region19: #{tpu_custom_call.1} parent=1 // pred_check_branch
      %46 = sbr.rel (0) target = $region21
    $region20: #{tpu_custom_call.1} parent=1 // pred_region
      %s48 = ssub.s32 256, 256
      %49 = vsyncadd [#allocation7], %s48
      %s50 = sshll.u32 [#allocation8], 4
      %s51 = int_to_ptr.vmem [resolvable:$true] %s50
      %56 = dma.hbm_to_vmem [thread:$0]  %s4, 256, %s51, [#allocation7], 64, 64, 4
    $region21: #{tpu_custom_call.1} parent=1 // pred_fallthru
      _
    // Predicated region
    $region22: #{tpu_custom_call.1} parent=1 // pred_check
      _
    $region23: #{tpu_custom_call.1} parent=1 // pred_check_branch
      %58 = sbr.rel (0) target = $region25
    $region24: #{tpu_custom_call.1} parent=1 // pred_region
      _
    $region25: #{tpu_custom_call.1} parent=1 // pred_fallthru
      _
    // Predicated region
    $region26: #{tpu_custom_call.1} parent=1 // pred_check
      _
    $region27: #{tpu_custom_call.1} parent=1 // pred_check_branch
      %60 = sbr.rel (0) target = $region29
    $region28: #{tpu_custom_call.1} parent=1 // pred_region
      %s62 = ssub.s32 2048, 2048
      %63 = vsyncadd [#allocation10], %s62
      %s64 = sshll.u32 [#allocation9], 4
      %s65 = int_to_ptr.vmem [resolvable:$true] %s64
      %70 = dma.hbm_to_vmem [thread:$0]  %s6, 2048, %s65, [#allocation10], 64, 64, 4
    $region29: #{tpu_custom_call.1} parent=1 // pred_fallthru
      _
    // Predicated region
    $region30: #{tpu_custom_call.1} parent=1 // pred_check
      _
    $region31: #{tpu_custom_call.1} parent=1 // pred_check_branch
      %72 = sbr.rel (0) target = $region33
    $region32: #{tpu_custom_call.1} parent=1 // pred_region
      _
    $region33: #{tpu_custom_call.1} parent=1 // pred_fallthru
      _
    // Predicated region
    $region34: #{tpu_custom_call.1} parent=1 // pred_check
      _
    $region35: #{tpu_custom_call.1} parent=1 // pred_check_branch
      %74 = sbr.rel (0) target = $region37
    $region36: #{tpu_custom_call.1} parent=1 // pred_region
      %s76 = ssub.s32 1024, 1024
      %77 = vsyncadd [#allocation10], %s76
      %s78 = sshll.u32 [#allocation11], 4
      %s79 = int_to_ptr.vmem [resolvable:$true] %s78
      %84 = dma.hbm_to_vmem [thread:$0]  %s8, 1024, %s79, [#allocation10], 64, 64, 4
    $region37: #{tpu_custom_call.1} parent=1 // pred_fallthru
      _
    // Predicated region
    $region38: #{tpu_custom_call.1} parent=1 // pred_check
      _
    $region39: #{tpu_custom_call.1} parent=1 // pred_check_branch
      %86 = sbr.rel (0) target = $region41
    $region40: #{tpu_custom_call.1} parent=1 // pred_region
      _
    $region41: #{tpu_custom_call.1} parent=1 // pred_fallthru
      _
    // Predicated region
    $region42: #{tpu_custom_call.1} parent=1 // pred_check
      _
    $region43: #{tpu_custom_call.1} parent=1 // pred_check_branch
      %88 = sbr.rel (0) target = $region45
    $region44: #{tpu_custom_call.1} parent=1 // pred_region
      %89 = dma.done [#allocation4], 64
    $region45: #{tpu_custom_call.1} parent=1 // pred_fallthru
      _
    // Predicated region
    $region46: #{tpu_custom_call.1} parent=1 // pred_check
      _
    $region47: #{tpu_custom_call.1} parent=1 // pred_check_branch
      %91 = sbr.rel (0) target = $region49
    $region48: #{tpu_custom_call.1} parent=1 // pred_region
      %92 = dma.done [#allocation7], 256
    $region49: #{tpu_custom_call.1} parent=1 // pred_fallthru
      _
    // Predicated region
    $region50: #{tpu_custom_call.1} parent=1 // pred_check
      _
    $region51: #{tpu_custom_call.1} parent=1 // pred_check_branch
      %94 = sbr.rel (0) target = $region53
    $region52: #{tpu_custom_call.1} parent=1 // pred_region
      %95 = dma.done [#allocation7], 256
    $region53: #{tpu_custom_call.1} parent=1 // pred_fallthru
      _
    // Predicated region
    $region54: #{tpu_custom_call.1} parent=1 // pred_check
      _
    $region55: #{tpu_custom_call.1} parent=1 // pred_check_branch
      %97 = sbr.rel (0) target = $region57
    $region56: #{tpu_custom_call.1} parent=1 // pred_region
      %98 = dma.done [#allocation10], 2048
    $region57: #{tpu_custom_call.1} parent=1 // pred_fallthru
      _
    // Predicated region
    $region58: #{tpu_custom_call.1} parent=1 // pred_check
      _
    $region59: #{tpu_custom_call.1} parent=1 // pred_check_branch
      %100 = sbr.rel (0) target = $region61
    $region60: #{tpu_custom_call.1} parent=1 // pred_region
      %101 = dma.done [#allocation10], 1024
    $region61: #{tpu_custom_call.1} parent=1 // pred_fallthru
      _
    %v103 = vld [vmem:[#allocation3] sm:$0xf]
    %v104 = vld [vmem:[%s2] sm:$0xf]
    %v105 = vld [vmem:[%s2 + $0x4] sm:$0xf]
    %v106 = vld [vmem:[%s2 + $0x8] sm:$0xf]
    %v107 = vld [vmem:[%s2 + $0xc] sm:$0xf]
    %v108 = vld [vmem:[%s5] sm:$0x1]
    %v109 = vld [vmem:[%s0] sm:$0xf]
    %v110 = vld [vmem:[%s0 + $0x4] sm:$0xf]
    %v112 = vlaneseq
    %v113 = vshrl.u32 %v112, 7
    %v114 = vsub.s32 0, %v113
    %v115 = vrot.slane %v108, %v114
    %v119 = vunpack.c.l.b16 %v109
    %v120 = vunpack.c.l.b16 %v110
    %v121 = vpack.c.b16 %v120, %v119
    %vm122 = vcmask 64512
    %v124 = vsel %vm122, %v121, 0
    %vm126 = vcmask 1043456
    %v128 = vsel %vm126, %v103, 0
    %130 = vmatprep.subr.bf16.mxu0 0
    %131 = vmatpush1.bf16.msra.mxu0 %v128
    %132 = vmatprep.subr.bf16.mxu0 0
    %133 = vmatpush1.bf16.msra.mxu0 0
    %134 = vmatprep.subr.bf16.mxu0 0
    %135 = vmatpush1.bf16.msra.mxu0 0
    %136 = vmatprep.subr.bf16.mxu0 0
    %137 = vmatpush1.bf16.msra.mxu0 0
    %138 = vmatprep.subr.bf16.mxu0 0
    %139 = vmatpush1.bf16.msra.mxu0 0
    %140 = vmatprep.subr.bf16.mxu0 0
    %141 = vmatpush1.bf16.msra.mxu0 0
    %142 = vmatprep.subr.bf16.mxu0 0
    %143 = vmatpush1.bf16.msra.mxu0 0
    %144 = vmatprep.subr.bf16.mxu0 0
    %145 = vmatpush1.bf16.msra.mxu0 0
    %146 = vmatprep.subr.bf16.mxu0 0
    %147 = vmatpush1.bf16.msra.mxu0 0
    %148 = vmatprep.subr.bf16.mxu0 0
    %149 = vmatpush1.bf16.msra.mxu0 0
    %150 = vmatprep.subr.bf16.mxu0 0
    %151 = vmatpush1.bf16.msra.mxu0 0
    %152 = vmatprep.subr.bf16.mxu0 0
    %153 = vmatpush1.bf16.msra.mxu0 0
    %154 = vmatprep.subr.bf16.mxu0 0
    %155 = vmatpush1.bf16.msra.mxu0 0
    %156 = vmatprep.subr.bf16.mxu0 0
    %157 = vmatpush1.bf16.msra.mxu0 0
    %158 = vmatprep.subr.bf16.mxu0 0
    %159 = vmatpush1.bf16.msra.mxu0 0
    %160 = vmatprep.subr.bf16.mxu0 0
    %161 = vmatpush1.bf16.msra.mxu0 0
    %162 = vmatprep.mubr.bf16.mxu0 0
    %163 = vmatmul.mubr.bf16.gmra.mrb[0].mxu0 %v124
    %v164 = vpop.f32.mrb[0].mxu0
    %v165 = vadd.f32 %v115, %v164
    %v166 = vpop.f32.mrb[0].mxu0
    %v167 = vpop.f32.mrb[0].mxu0
    %v168 = vadd.f32 %v115, %v167
    %v169 = vpop.f32.mrb[0].mxu0
    %170 = vdwg.mxu0
    %v175 = vunpack.c.l.b16 %v104
    %v176 = vunpack.c.l.b16 %v105
    %v177 = vunpack.c.l.b16 %v106
    %v178 = vunpack.c.l.b16 %v107
    %v179 = vpack.c.b16 %v176, %v175
    %v180 = vpack.c.b16 %v178, %v177
    %vm183 = vcmask 261120
    %v185 = vsel %vm183, 0, 0
    %187 = vmatprep.subr.bf16.mxu0 0
    %188 = vmatpush1.bf16.msra.mxu0 %v179
    %189 = vmatprep.subr.bf16.mxu0 0
    %190 = vmatpush1.bf16.msra.mxu0 %v180
    %191 = vmatprep.subr.bf16.mxu0 0
    %192 = vmatpush1.bf16.msra.mxu0 0
    %193 = vmatprep.subr.bf16.mxu0 0
    %194 = vmatpush1.bf16.msra.mxu0 0
    %195 = vmatprep.subr.bf16.mxu0 0
    %196 = vmatpush1.bf16.msra.mxu0 0
    %197 = vmatprep.subr.bf16.mxu0 0
    %198 = vmatpush1.bf16.msra.mxu0 0
    %199 = vmatprep.subr.bf16.mxu0 0
    %200 = vmatpush1.bf16.msra.mxu0 0
    %201 = vmatprep.subr.bf16.mxu0 0
    %202 = vmatpush1.bf16.msra.mxu0 0
    %203 = vmatprep.subr.bf16.mxu0 0
    %204 = vmatpush1.bf16.msra.mxu0 0
    %205 = vmatprep.subr.bf16.mxu0 0
    %206 = vmatpush1.bf16.msra.mxu0 0
    %207 = vmatprep.subr.bf16.mxu0 0
    %208 = vmatpush1.bf16.msra.mxu0 0
    %209 = vmatprep.subr.bf16.mxu0 0
    %210 = vmatpush1.bf16.msra.mxu0 0
    %211 = vmatprep.subr.bf16.mxu0 0
    %212 = vmatpush1.bf16.msra.mxu0 0
    %213 = vmatprep.subr.bf16.mxu0 0
    %214 = vmatpush1.bf16.msra.mxu0 0
    %215 = vmatprep.subr.bf16.mxu0 0
    %216 = vmatpush1.bf16.msra.mxu0 0
    %217 = vmatprep.subr.bf16.mxu0 0
    %218 = vmatpush1.bf16.msra.mxu0 0
    %219 = vmatprep.mubr.bf16.mxu0 0
    %220 = vmatmul.mubr.bf16.gmra.mrb[0].mxu0 %v185
    %v221 = vpop.f32.mrb[0].mxu0
    %v222 = vadd.f32 0.0, %v221
    %v223 = vpop.f32.mrb[0].mxu0
    %v224 = vpop.f32.mrb[0].mxu0
    %v225 = vpop.f32.mrb[0].mxu0
    %226 = vdwg.mxu0
    %v227 = vadd.f32 %v165, %v222
    %v228 = vxor.u32 %v227, 2147483648
    %v229 = vmul.f32 %v228, 1.442695
    %v230 = vpow.pop %v229
    %v231 = vadd.f32 %v230, 1.0
    %v232 = vrcp.pop %v231
    %v233 = vmul.f32 1.0, %v232
    %v234 = vtanh.pop %v227
    %v235 = vmul.f32 %v233, 0.0
    %237 = vrot.lane.b32.xlu0 %v234, 32
    %v238 = vpop.permute.xlu0 %237
    %v240 = vmul.f32 %v233, %v238
    %242 = vrot.lane.b32.xlu0 %v240, 32
    %v243 = vpop.permute.xlu0 %242
    %v245 = vadd.f32 %v235, %v243
    %v246 = vtanh.pop %v245
    %248 = vrot.lane.b32.xlu0 %v246, 32
    %v249 = vpop.permute.xlu0 %248
    %v251 = vmul.f32 %v233, %v249
    %v252 = vpack.c.bf16 %v251, %v251
    %254 = vrot.lane.b32.xlu0 %v252, 64
    %v255 = vpop.permute.xlu0 %254
    %vm257 = vcmask 253952
    %258 = vst.msk [vmem:[#allocation2] sm:$0x1] %vm257, %v255
    %v260 = vsel %vm183, %v255, 0
    %262 = vmatprep.subr.bf16.mxu0 0
    %263 = vmatpush1.bf16.msra.mxu0 %v179
    %264 = vmatprep.subr.bf16.mxu0 0
    %265 = vmatpush1.bf16.msra.mxu0 %v180
    %266 = vmatprep.subr.bf16.mxu0 0
    %267 = vmatpush1.bf16.msra.mxu0 0
    %268 = vmatprep.subr.bf16.mxu0 0
    %269 = vmatpush1.bf16.msra.mxu0 0
    %270 = vmatprep.subr.bf16.mxu0 0
    %271 = vmatpush1.bf16.msra.mxu0 0
    %272 = vmatprep.subr.bf16.mxu0 0
    %273 = vmatpush1.bf16.msra.mxu0 0
    %274 = vmatprep.subr.bf16.mxu0 0
    %275 = vmatpush1.bf16.msra.mxu0 0
    %276 = vmatprep.subr.bf16.mxu0 0
    %277 = vmatpush1.bf16.msra.mxu0 0
    %278 = vmatprep.subr.bf16.mxu0 0
    %279 = vmatpush1.bf16.msra.mxu0 0
    %280 = vmatprep.subr.bf16.mxu0 0
    %281 = vmatpush1.bf16.msra.mxu0 0
    %282 = vmatprep.subr.bf16.mxu0 0
    %283 = vmatpush1.bf16.msra.mxu0 0
    %284 = vmatprep.subr.bf16.mxu0 0
    %285 = vmatpush1.bf16.msra.mxu0 0
    %286 = vmatprep.subr.bf16.mxu0 0
    %287 = vmatpush1.bf16.msra.mxu0 0
    %288 = vmatprep.subr.bf16.mxu0 0
    %289 = vmatpush1.bf16.msra.mxu0 0
    %290 = vmatprep.subr.bf16.mxu0 0
    %291 = vmatpush1.bf16.msra.mxu0 0
    %292 = vmatprep.subr.bf16.mxu0 0
    %293 = vmatpush1.bf16.msra.mxu0 0
    %294 = vmatprep.mubr.bf16.mxu0 0
    %295 = vmatmul.mubr.bf16.gmra.mrb[0].mxu0 %v260
    %v296 = vpop.f32.mrb[0].mxu0
    %v297 = vadd.f32 0.0, %v296
    %v298 = vpop.f32.mrb[0].mxu0
    %v299 = vpop.f32.mrb[0].mxu0
    %v300 = vpop.f32.mrb[0].mxu0
    %301 = vdwg.mxu0
    %v303 = vrot.slane %v297, 6
    %v305 = vadd.f32 %v165, %v303
    %v306 = vxor.u32 %v305, 2147483648
    %v307 = vmul.f32 %v306, 1.442695
    %v308 = vpow.pop %v307
    %v309 = vadd.f32 %v308, 1.0
    %v310 = vrcp.pop %v309
    %v311 = vmul.f32 1.0, %v310
    %v312 = vtanh.pop %v305
    %v314 = vrot.slane %v245, 6
    %v316 = vmul.f32 %v311, %v314
    %318 = vrot.lane.b32.xlu0 %v312, 32
    %v319 = vpop.permute.xlu0 %318
    %v321 = vmul.f32 %v311, %v319
    %323 = vrot.lane.b32.xlu0 %v321, 32
    %v324 = vpop.permute.xlu0 %323
    %v326 = vadd.f32 %v316, %v324
    %v327 = vtanh.pop %v326
    %329 = vrot.lane.b32.xlu0 %v327, 32
    %v330 = vpop.permute.xlu0 %329
    %v332 = vmul.f32 %v311, %v330
    %v333 = vpack.c.bf16 %v332, %v332
    %335 = vrot.lane.b32.xlu0 %v333, 64
    %v336 = vpop.permute.xlu0 %335
    %vm338 = vcmask 254977
    %339 = vst.msk [vmem:[#allocation2] sm:$0x2] %vm338, %v336
    %v340 = vrot.slane %v333, 1
    %341 = vrot.lane.b32.xlu0 %v340, 64
    %v342 = vpop.permute.xlu0 %341
    %v344 = vsel %vm183, %v342, 0
    %346 = vmatprep.subr.bf16.mxu0 0
    %347 = vmatpush1.bf16.msra.mxu0 %v179
    %348 = vmatprep.subr.bf16.mxu0 0
    %349 = vmatpush1.bf16.msra.mxu0 %v180
    %350 = vmatprep.subr.bf16.mxu0 0
    %351 = vmatpush1.bf16.msra.mxu0 0
    %352 = vmatprep.subr.bf16.mxu0 0
    %353 = vmatpush1.bf16.msra.mxu0 0
    %354 = vmatprep.subr.bf16.mxu0 0
    %355 = vmatpush1.bf16.msra.mxu0 0
    %356 = vmatprep.subr.bf16.mxu0 0
    %357 = vmatpush1.bf16.msra.mxu0 0
    %358 = vmatprep.subr.bf16.mxu0 0
    %359 = vmatpush1.bf16.msra.mxu0 0
    %360 = vmatprep.subr.bf16.mxu0 0
    %361 = vmatpush1.bf16.msra.mxu0 0
    %362 = vmatprep.subr.bf16.mxu0 0
    %363 = vmatpush1.bf16.msra.mxu0 0
    %364 = vmatprep.subr.bf16.mxu0 0
    %365 = vmatpush1.bf16.msra.mxu0 0
    %366 = vmatprep.subr.bf16.mxu0 0
    %367 = vmatpush1.bf16.msra.mxu0 0
    %368 = vmatprep.subr.bf16.mxu0 0
    %369 = vmatpush1.bf16.msra.mxu0 0
    %370 = vmatprep.subr.bf16.mxu0 0
    %371 = vmatpush1.bf16.msra.mxu0 0
    %372 = vmatprep.subr.bf16.mxu0 0
    %373 = vmatpush1.bf16.msra.mxu0 0
    %374 = vmatprep.subr.bf16.mxu0 0
    %375 = vmatpush1.bf16.msra.mxu0 0
    %376 = vmatprep.subr.bf16.mxu0 0
    %377 = vmatpush1.bf16.msra.mxu0 0
    %378 = vmatprep.mubr.bf16.mxu0 0
    %379 = vmatmul.mubr.bf16.gmra.mrb[0].mxu0 %v344
    %v380 = vpop.f32.mrb[0].mxu0
    %v381 = vadd.f32 0.0, %v380
    %v382 = vpop.f32.mrb[0].mxu0
    %v383 = vpop.f32.mrb[0].mxu0
    %v384 = vpop.f32.mrb[0].mxu0
    %385 = vdwg.mxu0
    %v387 = vrot.slane %v381, 4
    %v389 = vadd.f32 %v165, %v387
    %v390 = vxor.u32 %v389, 2147483648
    %v391 = vmul.f32 %v390, 1.442695
    %v392 = vpow.pop %v391
    %v393 = vadd.f32 %v392, 1.0
    %v394 = vrcp.pop %v393
    %v395 = vmul.f32 1.0, %v394
    %v396 = vtanh.pop %v389
    %v398 = vrot.slane %v326, 6
    %v400 = vmul.f32 %v395, %v398
    %402 = vrot.lane.b32.xlu0 %v396, 32
    %v403 = vpop.permute.xlu0 %402
    %v405 = vmul.f32 %v395, %v403
    %407 = vrot.lane.b32.xlu0 %v405, 32
    %v408 = vpop.permute.xlu0 %407
    %v410 = vadd.f32 %v400, %v408
    %v411 = vtanh.pop %v410
    %413 = vrot.lane.b32.xlu0 %v411, 32
    %v414 = vpop.permute.xlu0 %413
    %v416 = vmul.f32 %v395, %v414
    %v417 = vpack.c.bf16 %v416, %v416
    %419 = vrot.lane.b32.xlu0 %v417, 64
    %v420 = vpop.permute.xlu0 %419
    %vm422 = vcmask 256002
    %423 = vst.msk [vmem:[#allocation2] sm:$0x4] %vm422, %v420
    %v424 = vrot.slane %v417, 2
    %425 = vrot.lane.b32.xlu0 %v424, 64
    %v426 = vpop.permute.xlu0 %425
    %v428 = vsel %vm183, %v426, 0
    %430 = vmatprep.subr.bf16.mxu0 0
    %431 = vmatpush1.bf16.msra.mxu0 %v179
    %432 = vmatprep.subr.bf16.mxu0 0
    %433 = vmatpush1.bf16.msra.mxu0 %v180
    %434 = vmatprep.subr.bf16.mxu0 0
    %435 = vmatpush1.bf16.msra.mxu0 0
    %436 = vmatprep.subr.bf16.mxu0 0
    %437 = vmatpush1.bf16.msra.mxu0 0
    %438 = vmatprep.subr.bf16.mxu0 0
    %439 = vmatpush1.bf16.msra.mxu0 0
    %440 = vmatprep.subr.bf16.mxu0 0
    %441 = vmatpush1.bf16.msra.mxu0 0
    %442 = vmatprep.subr.bf16.mxu0 0
    %443 = vmatpush1.bf16.msra.mxu0 0
    %444 = vmatprep.subr.bf16.mxu0 0
    %445 = vmatpush1.bf16.msra.mxu0 0
    %446 = vmatprep.subr.bf16.mxu0 0
    %447 = vmatpush1.bf16.msra.mxu0 0
    %448 = vmatprep.subr.bf16.mxu0 0
    %449 = vmatpush1.bf16.msra.mxu0 0
    %450 = vmatprep.subr.bf16.mxu0 0
    %451 = vmatpush1.bf16.msra.mxu0 0
    %452 = vmatprep.subr.bf16.mxu0 0
    %453 = vmatpush1.bf16.msra.mxu0 0
    %454 = vmatprep.subr.bf16.mxu0 0
    %455 = vmatpush1.bf16.msra.mxu0 0
    %456 = vmatprep.subr.bf16.mxu0 0
    %457 = vmatpush1.bf16.msra.mxu0 0
    %458 = vmatprep.subr.bf16.mxu0 0
    %459 = vmatpush1.bf16.msra.mxu0 0
    %460 = vmatprep.subr.bf16.mxu0 0
    %461 = vmatpush1.bf16.msra.mxu0 0
    %462 = vmatprep.mubr.bf16.mxu0 0
    %463 = vmatmul.mubr.bf16.gmra.mrb[0].mxu0 %v428
    %v464 = vpop.f32.mrb[0].mxu0
    %v465 = vadd.f32 0.0, %v464
    %v466 = vpop.f32.mrb[0].mxu0
    %v467 = vpop.f32.mrb[0].mxu0
    %v468 = vpop.f32.mrb[0].mxu0
    %469 = vdwg.mxu0
    %v471 = vrot.slane %v465, 2
    %v473 = vadd.f32 %v165, %v471
    %v474 = vxor.u32 %v473, 2147483648
    %v475 = vmul.f32 %v474, 1.442695
    %v476 = vpow.pop %v475
    %v477 = vadd.f32 %v476, 1.0
    %v478 = vrcp.pop %v477
    %v479 = vmul.f32 1.0, %v478
    %v480 = vtanh.pop %v473
    %v482 = vrot.slane %v410, 6
    %v484 = vmul.f32 %v479, %v482
    %486 = vrot.lane.b32.xlu0 %v480, 32
    %v487 = vpop.permute.xlu0 %486
    %v489 = vmul.f32 %v479, %v487
    %491 = vrot.lane.b32.xlu0 %v489, 32
    %v492 = vpop.permute.xlu0 %491
    %v494 = vadd.f32 %v484, %v492
    %v495 = vtanh.pop %v494
    %497 = vrot.lane.b32.xlu0 %v495, 32
    %v498 = vpop.permute.xlu0 %497
    %v500 = vmul.f32 %v479, %v498
    %v501 = vpack.c.bf16 %v500, %v500
    %503 = vrot.lane.b32.xlu0 %v501, 64
    %v504 = vpop.permute.xlu0 %503
    %vm506 = vcmask 257027
    %507 = vst.msk [vmem:[#allocation2] sm:$0x8] %vm506, %v504
    %v508 = vrot.slane %v501, 3
    %509 = vrot.lane.b32.xlu0 %v508, 64
    %v510 = vpop.permute.xlu0 %509
    %v512 = vsel %vm183, %v510, 0
    %514 = vmatprep.subr.bf16.mxu0 0
    %515 = vmatpush1.bf16.msra.mxu0 %v179
    %516 = vmatprep.subr.bf16.mxu0 0
    %517 = vmatpush1.bf16.msra.mxu0 %v180
    %518 = vmatprep.subr.bf16.mxu0 0
    %519 = vmatpush1.bf16.msra.mxu0 0
    %520 = vmatprep.subr.bf16.mxu0 0
    %521 = vmatpush1.bf16.msra.mxu0 0
    %522 = vmatprep.subr.bf16.mxu0 0
    %523 = vmatpush1.bf16.msra.mxu0 0
    %524 = vmatprep.subr.bf16.mxu0 0
    %525 = vmatpush1.bf16.msra.mxu0 0
    %526 = vmatprep.subr.bf16.mxu0 0
    %527 = vmatpush1.bf16.msra.mxu0 0
    %528 = vmatprep.subr.bf16.mxu0 0
    %529 = vmatpush1.bf16.msra.mxu0 0
    %530 = vmatprep.subr.bf16.mxu0 0
    %531 = vmatpush1.bf16.msra.mxu0 0
    %532 = vmatprep.subr.bf16.mxu0 0
    %533 = vmatpush1.bf16.msra.mxu0 0
    %534 = vmatprep.subr.bf16.mxu0 0
    %535 = vmatpush1.bf16.msra.mxu0 0
    %536 = vmatprep.subr.bf16.mxu0 0
    %537 = vmatpush1.bf16.msra.mxu0 0
    %538 = vmatprep.subr.bf16.mxu0 0
    %539 = vmatpush1.bf16.msra.mxu0 0
    %540 = vmatprep.subr.bf16.mxu0 0
    %541 = vmatpush1.bf16.msra.mxu0 0
    %542 = vmatprep.subr.bf16.mxu0 0
    %543 = vmatpush1.bf16.msra.mxu0 0
    %544 = vmatprep.subr.bf16.mxu0 0
    %545 = vmatpush1.bf16.msra.mxu0 0
    %546 = vmatprep.mubr.bf16.mxu0 0
    %547 = vmatmul.mubr.bf16.gmra.mrb[0].mxu0 %v512
    %v548 = vpop.f32.mrb[0].mxu0
    %v549 = vadd.f32 0.0, %v548
    %v550 = vpop.f32.mrb[0].mxu0
    %v551 = vpop.f32.mrb[0].mxu0
    %v552 = vpop.f32.mrb[0].mxu0
    %553 = vdwg.mxu0
    %v554 = vadd.f32 %v168, %v549
    %v555 = vxor.u32 %v554, 2147483648
    %v556 = vmul.f32 %v555, 1.442695
    %v557 = vpow.pop %v556
    %v558 = vadd.f32 %v557, 1.0
    %v559 = vrcp.pop %v558
    %v560 = vmul.f32 1.0, %v559
    %v561 = vtanh.pop %v554
    %v563 = vrot.slane %v494, 6
    %v565 = vmul.f32 %v560, %v563
    %567 = vrot.lane.b32.xlu0 %v561, 32
    %v568 = vpop.permute.xlu0 %567
    %v570 = vmul.f32 %v560, %v568
    %572 = vrot.lane.b32.xlu0 %v570, 32
    %v573 = vpop.permute.xlu0 %572
    %v575 = vadd.f32 %v565, %v573
    %v576 = vtanh.pop %v575
    %578 = vrot.lane.b32.xlu0 %v576, 32
    %v579 = vpop.permute.xlu0 %578
    %v581 = vmul.f32 %v560, %v579
    %v582 = vpack.c.bf16 %v581, %v581
    %v584 = vrot.slane %v582, 4
    %585 = vrot.lane.b32.xlu0 %v584, 64
    %v586 = vpop.permute.xlu0 %585
    %vm588 = vcmask 258052
    %589 = vst.msk [vmem:[#allocation2] sm:$0x10] %vm588, %v586
    %590 = vrot.lane.b32.xlu0 %v582, 64
    %v591 = vpop.permute.xlu0 %590
    %v593 = vsel %vm183, %v591, 0
    %595 = vmatprep.subr.bf16.mxu0 0
    %596 = vmatpush1.bf16.msra.mxu0 %v179
    %597 = vmatprep.subr.bf16.mxu0 0
    %598 = vmatpush1.bf16.msra.mxu0 %v180
    %599 = vmatprep.subr.bf16.mxu0 0
    %600 = vmatpush1.bf16.msra.mxu0 0
    %601 = vmatprep.subr.bf16.mxu0 0
    %602 = vmatpush1.bf16.msra.mxu0 0
    %603 = vmatprep.subr.bf16.mxu0 0
    %604 = vmatpush1.bf16.msra.mxu0 0
    %605 = vmatprep.subr.bf16.mxu0 0
    %606 = vmatpush1.bf16.msra.mxu0 0
    %607 = vmatprep.subr.bf16.mxu0 0
    %608 = vmatpush1.bf16.msra.mxu0 0
    %609 = vmatprep.subr.bf16.mxu0 0
    %610 = vmatpush1.bf16.msra.mxu0 0
    %611 = vmatprep.subr.bf16.mxu0 0
    %612 = vmatpush1.bf16.msra.mxu0 0
    %613 = vmatprep.subr.bf16.mxu0 0
    %614 = vmatpush1.bf16.msra.mxu0 0
    %615 = vmatprep.subr.bf16.mxu0 0
    %616 = vmatpush1.bf16.msra.mxu0 0
    %617 = vmatprep.subr.bf16.mxu0 0
    %618 = vmatpush1.bf16.msra.mxu0 0
    %619 = vmatprep.subr.bf16.mxu0 0
    %620 = vmatpush1.bf16.msra.mxu0 0
    %621 = vmatprep.subr.bf16.mxu0 0
    %622 = vmatpush1.bf16.msra.mxu0 0
    %623 = vmatprep.subr.bf16.mxu0 0
    %624 = vmatpush1.bf16.msra.mxu0 0
    %625 = vmatprep.subr.bf16.mxu0 0
    %626 = vmatpush1.bf16.msra.mxu0 0
    %627 = vmatprep.mubr.bf16.mxu0 0
    %628 = vmatmul.mubr.bf16.gmra.mrb[0].mxu0 %v593
    %v629 = vpop.f32.mrb[0].mxu0
    %v630 = vadd.f32 0.0, %v629
    %v631 = vpop.f32.mrb[0].mxu0
    %v632 = vpop.f32.mrb[0].mxu0
    %v633 = vpop.f32.mrb[0].mxu0
    %634 = vdwg.mxu0
    %v636 = vrot.slane %v630, 6
    %v638 = vadd.f32 %v168, %v636
    %v639 = vxor.u32 %v638, 2147483648
    %v640 = vmul.f32 %v639, 1.442695
    %v641 = vpow.pop %v640
    %v642 = vadd.f32 %v641, 1.0
    %v643 = vrcp.pop %v642
    %v644 = vmul.f32 1.0, %v643
    %v645 = vtanh.pop %v638
    %v647 = vrot.slane %v575, 6
    %v649 = vmul.f32 %v644, %v647
    %651 = vrot.lane.b32.xlu0 %v645, 32
    %v652 = vpop.permute.xlu0 %651
    %v654 = vmul.f32 %v644, %v652
    %656 = vrot.lane.b32.xlu0 %v654, 32
    %v657 = vpop.permute.xlu0 %656
    %v659 = vadd.f32 %v649, %v657
    %v660 = vtanh.pop %v659
    %662 = vrot.lane.b32.xlu0 %v660, 32
    %v663 = vpop.permute.xlu0 %662
    %v665 = vmul.f32 %v644, %v663
    %v666 = vpack.c.bf16 %v665, %v665
    %v668 = vrot.slane %v666, 4
    %669 = vrot.lane.b32.xlu0 %v668, 64
    %v670 = vpop.permute.xlu0 %669
    %vm672 = vcmask 259077
    %673 = vst.msk [vmem:[#allocation2] sm:$0x20] %vm672, %v670
    %v674 = vrot.slane %v666, 1
    %675 = vrot.lane.b32.xlu0 %v674, 64
    %v676 = vpop.permute.xlu0 %675
    %v678 = vsel %vm183, %v676, 0
    %680 = vmatprep.subr.bf16.mxu0 0
    %681 = vmatpush1.bf16.msra.mxu0 %v179
    %682 = vmatprep.subr.bf16.mxu0 0
    %683 = vmatpush1.bf16.msra.mxu0 %v180
    %684 = vmatprep.subr.bf16.mxu0 0
    %685 = vmatpush1.bf16.msra.mxu0 0
    %686 = vmatprep.subr.bf16.mxu0 0
    %687 = vmatpush1.bf16.msra.mxu0 0
    %688 = vmatprep.subr.bf16.mxu0 0
    %689 = vmatpush1.bf16.msra.mxu0 0
    %690 = vmatprep.subr.bf16.mxu0 0
    %691 = vmatpush1.bf16.msra.mxu0 0
    %692 = vmatprep.subr.bf16.mxu0 0
    %693 = vmatpush1.bf16.msra.mxu0 0
    %694 = vmatprep.subr.bf16.mxu0 0
    %695 = vmatpush1.bf16.msra.mxu0 0
    %696 = vmatprep.subr.bf16.mxu0 0
    %697 = vmatpush1.bf16.msra.mxu0 0
    %698 = vmatprep.subr.bf16.mxu0 0
    %699 = vmatpush1.bf16.msra.mxu0 0
    %700 = vmatprep.subr.bf16.mxu0 0
    %701 = vmatpush1.bf16.msra.mxu0 0
    %702 = vmatprep.subr.bf16.mxu0 0
    %703 = vmatpush1.bf16.msra.mxu0 0
    %704 = vmatprep.subr.bf16.mxu0 0
    %705 = vmatpush1.bf16.msra.mxu0 0
    %706 = vmatprep.subr.bf16.mxu0 0
    %707 = vmatpush1.bf16.msra.mxu0 0
    %708 = vmatprep.subr.bf16.mxu0 0
    %709 = vmatpush1.bf16.msra.mxu0 0
    %710 = vmatprep.subr.bf16.mxu0 0
    %711 = vmatpush1.bf16.msra.mxu0 0
    %712 = vmatprep.mubr.bf16.mxu0 0
    %713 = vmatmul.mubr.bf16.gmra.mrb[0].mxu0 %v678
    %v714 = vpop.f32.mrb[0].mxu0
    %v715 = vadd.f32 0.0, %v714
    %v716 = vpop.f32.mrb[0].mxu0
    %v717 = vpop.f32.mrb[0].mxu0
    %v718 = vpop.f32.mrb[0].mxu0
    %719 = vdwg.mxu0
    %v721 = vrot.slane %v715, 4
    %v723 = vadd.f32 %v168, %v721
    %v724 = vxor.u32 %v723, 2147483648
    %v725 = vmul.f32 %v724, 1.442695
    %v726 = vpow.pop %v725
    %v727 = vadd.f32 %v726, 1.0
    %v728 = vrcp.pop %v727
    %v729 = vmul.f32 1.0, %v728
    %v730 = vtanh.pop %v723
    %v732 = vrot.slane %v659, 6
    %v734 = vmul.f32 %v729, %v732
    %736 = vrot.lane.b32.xlu0 %v730, 32
    %v737 = vpop.permute.xlu0 %736
    %v739 = vmul.f32 %v729, %v737
    %741 = vrot.lane.b32.xlu0 %v739, 32
    %v742 = vpop.permute.xlu0 %741
    %v744 = vadd.f32 %v734, %v742
    %v745 = vtanh.pop %v744
    %747 = vrot.lane.b32.xlu0 %v745, 32
    %v748 = vpop.permute.xlu0 %747
    %v750 = vmul.f32 %v729, %v748
    %v751 = vpack.c.bf16 %v750, %v750
    %v753 = vrot.slane %v751, 4
    %754 = vrot.lane.b32.xlu0 %v753, 64
    %v755 = vpop.permute.xlu0 %754
    %vm757 = vcmask 260102
    %758 = vst.msk [vmem:[#allocation2] sm:$0x40] %vm757, %v755
    %v759 = vrot.slane %v751, 2
    %760 = vrot.lane.b32.xlu0 %v759, 64
    %v761 = vpop.permute.xlu0 %760
    %v763 = vsel %vm183, %v761, 0
    %765 = vmatprep.subr.bf16.mxu0 0
    %766 = vmatpush1.bf16.msra.mxu0 %v179
    %767 = vmatprep.subr.bf16.mxu0 0
    %768 = vmatpush1.bf16.msra.mxu0 %v180
    %769 = vmatprep.subr.bf16.mxu0 0
    %770 = vmatpush1.bf16.msra.mxu0 0
    %771 = vmatprep.subr.bf16.mxu0 0
    %772 = vmatpush1.bf16.msra.mxu0 0
    %773 = vmatprep.subr.bf16.mxu0 0
    %774 = vmatpush1.bf16.msra.mxu0 0
    %775 = vmatprep.subr.bf16.mxu0 0
    %776 = vmatpush1.bf16.msra.mxu0 0
    %777 = vmatprep.subr.bf16.mxu0 0
    %778 = vmatpush1.bf16.msra.mxu0 0
    %779 = vmatprep.subr.bf16.mxu0 0
    %780 = vmatpush1.bf16.msra.mxu0 0
    %781 = vmatprep.subr.bf16.mxu0 0
    %782 = vmatpush1.bf16.msra.mxu0 0
    %783 = vmatprep.subr.bf16.mxu0 0
    %784 = vmatpush1.bf16.msra.mxu0 0
    %785 = vmatprep.subr.bf16.mxu0 0
    %786 = vmatpush1.bf16.msra.mxu0 0
    %787 = vmatprep.subr.bf16.mxu0 0
    %788 = vmatpush1.bf16.msra.mxu0 0
    %789 = vmatprep.subr.bf16.mxu0 0
    %790 = vmatpush1.bf16.msra.mxu0 0
    %791 = vmatprep.subr.bf16.mxu0 0
    %792 = vmatpush1.bf16.msra.mxu0 0
    %793 = vmatprep.subr.bf16.mxu0 0
    %794 = vmatpush1.bf16.msra.mxu0 0
    %795 = vmatprep.subr.bf16.mxu0 0
    %796 = vmatpush1.bf16.msra.mxu0 0
    %797 = vmatprep.mubr.bf16.mxu0 0
    %798 = vmatmul.mubr.bf16.gmra.mrb[0].mxu0 %v763
    %v799 = vpop.f32.mrb[0].mxu0
    %v800 = vadd.f32 0.0, %v799
    %v801 = vpop.f32.mrb[0].mxu0
    %v802 = vpop.f32.mrb[0].mxu0
    %v803 = vpop.f32.mrb[0].mxu0
    %804 = vdwg.mxu0
    %v806 = vrot.slane %v800, 2
    %v808 = vadd.f32 %v168, %v806
    %v809 = vxor.u32 %v808, 2147483648
    %v810 = vmul.f32 %v809, 1.442695
    %v811 = vpow.pop %v810
    %v812 = vadd.f32 %v811, 1.0
    %v813 = vrcp.pop %v812
    %v814 = vmul.f32 1.0, %v813
    %v815 = vtanh.pop %v808
    %v817 = vrot.slane %v744, 6
    %v819 = vmul.f32 %v814, %v817
    %821 = vrot.lane.b32.xlu0 %v815, 32
    %v822 = vpop.permute.xlu0 %821
    %v824 = vmul.f32 %v814, %v822
    %826 = vrot.lane.b32.xlu0 %v824, 32
    %v827 = vpop.permute.xlu0 %826
    %v829 = vadd.f32 %v819, %v827
    %v830 = vtanh.pop %v829
    %832 = vrot.lane.b32.xlu0 %v830, 32
    %v833 = vpop.permute.xlu0 %832
    %v835 = vmul.f32 %v814, %v833
    %v836 = vpack.c.bf16 %v835, %v835
    %v838 = vrot.slane %v836, 4
    %839 = vrot.lane.b32.xlu0 %v838, 64
    %v840 = vpop.permute.xlu0 %839
    %vm842 = vcmask 261127
    %843 = vst.msk [vmem:[#allocation2] sm:$0x80] %vm842, %v840
    %v844 = vld [vmem:[#allocation6] sm:$0xf]
    %v845 = vld [vmem:[#allocation6 + $0x4] sm:$0xf]
    %v846 = vld [vmem:[#allocation6 + $0x8] sm:$0xf]
    %v847 = vld [vmem:[#allocation6 + $0xc] sm:$0xf]
    %v848 = vld [vmem:[#allocation8] sm:$0xf]
    %v849 = vld [vmem:[#allocation8 + $0x4] sm:$0xf]
    %v850 = vld [vmem:[#allocation8 + $0x8] sm:$0xf]
    %v851 = vld [vmem:[#allocation8 + $0xc] sm:$0xf]
    %s852 = scalar_lea.vmem %s5, 1
    %v853 = vld [vmem:[%s852] sm:$0x1]
    %v854 = vld [vmem:[#allocation2] sm:$0xff]
    %v856 = vlaneseq
    %v857 = vshrl.u32 %v856, 7
    %v858 = vsub.s32 0, %v857
    %v859 = vrot.slane %v853, %v858
    %v865 = vunpack.c.l.b16 %v844
    %v866 = vunpack.c.l.b16 %v845
    %v867 = vunpack.c.l.b16 %v846
    %v868 = vunpack.c.l.b16 %v847
    %v869 = vpack.c.b16 %v866, %v865
    %v870 = vpack.c.b16 %v868, %v867
    %v874 = vsel %vm183, %v854, 0
    %876 = vmatprep.subr.bf16.mxu0 0
    %877 = vmatpush1.bf16.msra.mxu0 %v869
    %878 = vmatprep.subr.bf16.mxu0 0
    %879 = vmatpush1.bf16.msra.mxu0 %v870
    %880 = vmatprep.subr.bf16.mxu0 0
    %881 = vmatpush1.bf16.msra.mxu0 0
    %882 = vmatprep.subr.bf16.mxu0 0
    %883 = vmatpush1.bf16.msra.mxu0 0
    %884 = vmatprep.subr.bf16.mxu0 0
    %885 = vmatpush1.bf16.msra.mxu0 0
    %886 = vmatprep.subr.bf16.mxu0 0
    %887 = vmatpush1.bf16.msra.mxu0 0
    %888 = vmatprep.subr.bf16.mxu0 0
    %889 = vmatpush1.bf16.msra.mxu0 0
    %890 = vmatprep.subr.bf16.mxu0 0
    %891 = vmatpush1.bf16.msra.mxu0 0
    %892 = vmatprep.subr.bf16.mxu0 0
    %893 = vmatpush1.bf16.msra.mxu0 0
    %894 = vmatprep.subr.bf16.mxu0 0
    %895 = vmatpush1.bf16.msra.mxu0 0
    %896 = vmatprep.subr.bf16.mxu0 0
    %897 = vmatpush1.bf16.msra.mxu0 0
    %898 = vmatprep.subr.bf16.mxu0 0
    %899 = vmatpush1.bf16.msra.mxu0 0
    %900 = vmatprep.subr.bf16.mxu0 0
    %901 = vmatpush1.bf16.msra.mxu0 0
    %902 = vmatprep.subr.bf16.mxu0 0
    %903 = vmatpush1.bf16.msra.mxu0 0
    %904 = vmatprep.subr.bf16.mxu0 0
    %905 = vmatpush1.bf16.msra.mxu0 0
    %906 = vmatprep.subr.bf16.mxu0 0
    %907 = vmatpush1.bf16.msra.mxu0 0
    %908 = vmatprep.mubr.bf16.mxu0 0
    %909 = vmatmul.mubr.bf16.gmra.mrb[0].mxu0 %v874
    %v910 = vpop.f32.mrb[0].mxu0
    %v911 = vadd.f32 %v859, %v910
    %v912 = vpop.f32.mrb[0].mxu0
    %v913 = vpop.f32.mrb[0].mxu0
    %v914 = vadd.f32 %v859, %v913
    %v915 = vpop.f32.mrb[0].mxu0
    %916 = vdwg.mxu0
    %v921 = vunpack.c.l.b16 %v848
    %v922 = vunpack.c.l.b16 %v849
    %v923 = vunpack.c.l.b16 %v850
    %v924 = vunpack.c.l.b16 %v851
    %v925 = vpack.c.b16 %v922, %v921
    %v926 = vpack.c.b16 %v924, %v923
    %929 = vmatprep.subr.bf16.mxu0 0
    %930 = vmatpush1.bf16.msra.mxu0 %v925
    %931 = vmatprep.subr.bf16.mxu0 0
    %932 = vmatpush1.bf16.msra.mxu0 %v926
    %933 = vmatprep.subr.bf16.mxu0 0
    %934 = vmatpush1.bf16.msra.mxu0 0
    %935 = vmatprep.subr.bf16.mxu0 0
    %936 = vmatpush1.bf16.msra.mxu0 0
    %937 = vmatprep.subr.bf16.mxu0 0
    %938 = vmatpush1.bf16.msra.mxu0 0
    %939 = vmatprep.subr.bf16.mxu0 0
    %940 = vmatpush1.bf16.msra.mxu0 0
    %941 = vmatprep.subr.bf16.mxu0 0
    %942 = vmatpush1.bf16.msra.mxu0 0
    %943 = vmatprep.subr.bf16.mxu0 0
    %944 = vmatpush1.bf16.msra.mxu0 0
    %945 = vmatprep.subr.bf16.mxu0 0
    %946 = vmatpush1.bf16.msra.mxu0 0
    %947 = vmatprep.subr.bf16.mxu0 0
    %948 = vmatpush1.bf16.msra.mxu0 0
    %949 = vmatprep.subr.bf16.mxu0 0
    %950 = vmatpush1.bf16.msra.mxu0 0
    %951 = vmatprep.subr.bf16.mxu0 0
    %952 = vmatpush1.bf16.msra.mxu0 0
    %953 = vmatprep.subr.bf16.mxu0 0
    %954 = vmatpush1.bf16.msra.mxu0 0
    %955 = vmatprep.subr.bf16.mxu0 0
    %956 = vmatpush1.bf16.msra.mxu0 0
    %957 = vmatprep.subr.bf16.mxu0 0
    %958 = vmatpush1.bf16.msra.mxu0 0
    %959 = vmatprep.subr.bf16.mxu0 0
    %960 = vmatpush1.bf16.msra.mxu0 0
    %961 = vmatprep.mubr.bf16.mxu0 0
    %962 = vmatmul.mubr.bf16.gmra.mrb[0].mxu0 %v185
    %v963 = vpop.f32.mrb[0].mxu0
    %v964 = vadd.f32 0.0, %v963
    %v965 = vpop.f32.mrb[0].mxu0
    %v966 = vpop.f32.mrb[0].mxu0
    %v967 = vpop.f32.mrb[0].mxu0
    %968 = vdwg.mxu0
    %v969 = vadd.f32 %v911, %v964
    %v970 = vxor.u32 %v969, 2147483648
    %v971 = vmul.f32 %v970, 1.442695
    %v972 = vpow.pop %v971
    %v973 = vadd.f32 %v972, 1.0
    %v974 = vrcp.pop %v973
    %v975 = vmul.f32 1.0, %v974
    %v976 = vtanh.pop %v969
    %v977 = vmul.f32 %v975, 0.0
    %979 = vrot.lane.b32.xlu0 %v976, 32
    %v980 = vpop.permute.xlu0 %979
    %v982 = vmul.f32 %v975, %v980
    %984 = vrot.lane.b32.xlu0 %v982, 32
    %v985 = vpop.permute.xlu0 %984
    %v987 = vadd.f32 %v977, %v985
    %v988 = vtanh.pop %v987
    %990 = vrot.lane.b32.xlu0 %v988, 32
    %v991 = vpop.permute.xlu0 %990
    %v993 = vmul.f32 %v975, %v991
    %v994 = vmax.f32 %v993, 0.0
    %v995 = vpack.c.bf16 %v994, %v994
    %v996 = vld [vmem:[#allocation9] sm:$0xf]
    %v997 = vld [vmem:[#allocation9 + $0x4] sm:$0xf]
    %v998 = vld [vmem:[#allocation9 + $0x8] sm:$0xf]
    %v999 = vld [vmem:[#allocation9 + $0xc] sm:$0xf]
    %v1000 = vpack.c.bf16 %v993, %v993
    %1002 = vrot.lane.b32.xlu0 %v1000, 64
    %v1003 = vpop.permute.xlu0 %1002
    %v1005 = vsel %vm183, %v1003, 0
    %1007 = vmatprep.subr.bf16.mxu0 0
    %1008 = vmatpush1.bf16.msra.mxu0 %v925
    %1009 = vmatprep.subr.bf16.mxu0 0
    %1010 = vmatpush1.bf16.msra.mxu0 %v926
    %1011 = vmatprep.subr.bf16.mxu0 0
    %1012 = vmatpush1.bf16.msra.mxu0 0
    %1013 = vmatprep.subr.bf16.mxu0 0
    %1014 = vmatpush1.bf16.msra.mxu0 0
    %1015 = vmatprep.subr.bf16.mxu0 0
    %1016 = vmatpush1.bf16.msra.mxu0 0
    %1017 = vmatprep.subr.bf16.mxu0 0
    %1018 = vmatpush1.bf16.msra.mxu0 0
    %1019 = vmatprep.subr.bf16.mxu0 0
    %1020 = vmatpush1.bf16.msra.mxu0 0
    %1021 = vmatprep.subr.bf16.mxu0 0
    %1022 = vmatpush1.bf16.msra.mxu0 0
    %1023 = vmatprep.subr.bf16.mxu0 0
    %1024 = vmatpush1.bf16.msra.mxu0 0
    %1025 = vmatprep.subr.bf16.mxu0 0
    %1026 = vmatpush1.bf16.msra.mxu0 0
    %1027 = vmatprep.subr.bf16.mxu0 0
    %1028 = vmatpush1.bf16.msra.mxu0 0
    %1029 = vmatprep.subr.bf16.mxu0 0
    %1030 = vmatpush1.bf16.msra.mxu0 0
    %1031 = vmatprep.subr.bf16.mxu0 0
    %1032 = vmatpush1.bf16.msra.mxu0 0
    %1033 = vmatprep.subr.bf16.mxu0 0
    %1034 = vmatpush1.bf16.msra.mxu0 0
    %1035 = vmatprep.subr.bf16.mxu0 0
    %1036 = vmatpush1.bf16.msra.mxu0 0
    %1037 = vmatprep.subr.bf16.mxu0 0
    %1038 = vmatpush1.bf16.msra.mxu0 0
    %1039 = vmatprep.mubr.bf16.mxu0 0
    %1040 = vmatmul.mubr.bf16.gmra.mrb[0].mxu0 %v1005
    %v1041 = vpop.f32.mrb[0].mxu0
    %v1042 = vadd.f32 0.0, %v1041
    %v1043 = vpop.f32.mrb[0].mxu0
    %v1044 = vpop.f32.mrb[0].mxu0
    %v1045 = vpop.f32.mrb[0].mxu0
    %1046 = vdwg.mxu0
    %v1048 = vrot.slane %v1042, 6
    %v1050 = vadd.f32 %v911, %v1048
    %v1051 = vxor.u32 %v1050, 2147483648
    %v1052 = vmul.f32 %v1051, 1.442695
    %v1053 = vpow.pop %v1052
    %v1054 = vadd.f32 %v1053, 1.0
    %v1055 = vrcp.pop %v1054
    %v1056 = vmul.f32 1.0, %v1055
    %v1057 = vtanh.pop %v1050
    %v1059 = vrot.slane %v987, 6
    %v1061 = vmul.f32 %v1056, %v1059
    %1063 = vrot.lane.b32.xlu0 %v1057, 32
    %v1064 = vpop.permute.xlu0 %1063
    %v1066 = vmul.f32 %v1056, %v1064
    %1068 = vrot.lane.b32.xlu0 %v1066, 32
    %v1069 = vpop.permute.xlu0 %1068
    %v1071 = vadd.f32 %v1061, %v1069
    %v1072 = vtanh.pop %v1071
    %1074 = vrot.lane.b32.xlu0 %v1072, 32
    %v1075 = vpop.permute.xlu0 %1074
    %v1077 = vmul.f32 %v1056, %v1075
    %v1078 = vmax.f32 %v1077, 0.0
    %v1079 = vpack.c.bf16 %v1078, %v1078
    %s1080 = scalar_lea.vmem [#allocation9], 16
    %v1081 = vld [vmem:[%s1080] sm:$0xf]
    %v1082 = vld [vmem:[%s1080 + $0x4] sm:$0xf]
    %v1083 = vld [vmem:[%s1080 + $0x8] sm:$0xf]
    %v1084 = vld [vmem:[%s1080 + $0xc] sm:$0xf]
    %v1086 = vrot.slane %v1079, 1
    %1087 = vrot.lane.b32.xlu0 %v1086, 64
    %v1088 = vpop.permute.xlu0 %1087
    %v1093 = vunpack.c.l.b16 %v1081
    %v1094 = vunpack.c.l.b16 %v1082
    %v1095 = vunpack.c.l.b16 %v1083
    %v1096 = vunpack.c.l.b16 %v1084
    %v1097 = vpack.c.b16 %v1094, %v1093
    %v1098 = vpack.c.b16 %v1096, %v1095
    %v1102 = vsel %vm183, %v1088, 0
    %1104 = vmatprep.subr.bf16.mxu0 0
    %1105 = vmatpush1.bf16.msra.mxu0 %v1097
    %1106 = vmatprep.subr.bf16.mxu0 0
    %1107 = vmatpush1.bf16.msra.mxu0 %v1098
    %1108 = vmatprep.subr.bf16.mxu0 0
    %1109 = vmatpush1.bf16.msra.mxu0 0
    %1110 = vmatprep.subr.bf16.mxu0 0
    %1111 = vmatpush1.bf16.msra.mxu0 0
    %1112 = vmatprep.subr.bf16.mxu0 0
    %1113 = vmatpush1.bf16.msra.mxu0 0
    %1114 = vmatprep.subr.bf16.mxu0 0
    %1115 = vmatpush1.bf16.msra.mxu0 0
    %1116 = vmatprep.subr.bf16.mxu0 0
    %1117 = vmatpush1.bf16.msra.mxu0 0
    %1118 = vmatprep.subr.bf16.mxu0 0
    %1119 = vmatpush1.bf16.msra.mxu0 0
    %1120 = vmatprep.subr.bf16.mxu0 0
    %1121 = vmatpush1.bf16.msra.mxu0 0
    %1122 = vmatprep.subr.bf16.mxu0 0
    %1123 = vmatpush1.bf16.msra.mxu0 0
    %1124 = vmatprep.subr.bf16.mxu0 0
    %1125 = vmatpush1.bf16.msra.mxu0 0
    %1126 = vmatprep.subr.bf16.mxu0 0
    %1127 = vmatpush1.bf16.msra.mxu0 0
    %1128 = vmatprep.subr.bf16.mxu0 0
    %1129 = vmatpush1.bf16.msra.mxu0 0
    %1130 = vmatprep.subr.bf16.mxu0 0
    %1131 = vmatpush1.bf16.msra.mxu0 0
    %1132 = vmatprep.subr.bf16.mxu0 0
    %1133 = vmatpush1.bf16.msra.mxu0 0
    %1134 = vmatprep.subr.bf16.mxu0 0
    %1135 = vmatpush1.bf16.msra.mxu0 0
    %1136 = vmatprep.mubr.bf16.mxu0 0
    %1137 = vmatmul.mubr.bf16.gmra.mrb[0].mxu0 %v1102
    %v1138 = vpop.f32.mrb[0].mxu0
    %v1139 = vadd.f32 0.0, %v1138
    %v1140 = vpop.f32.mrb[0].mxu0
    %v1141 = vpop.f32.mrb[0].mxu0
    %v1142 = vpop.f32.mrb[0].mxu0
    %1143 = vdwg.mxu0
    %1145 = vrot.lane.b32.xlu0 %v995, 64
    %v1146 = vpop.permute.xlu0 %1145
    %v1151 = vunpack.c.l.b16 %v996
    %v1152 = vunpack.c.l.b16 %v997
    %v1153 = vunpack.c.l.b16 %v998
    %v1154 = vunpack.c.l.b16 %v999
    %v1155 = vpack.c.b16 %v1152, %v1151
    %v1156 = vpack.c.b16 %v1154, %v1153
    %v1160 = vsel %vm183, %v1146, 0
    %1162 = vmatprep.subr.bf16.mxu0 0
    %1163 = vmatpush1.bf16.msra.mxu0 %v1155
    %1164 = vmatprep.subr.bf16.mxu0 0
    %1165 = vmatpush1.bf16.msra.mxu0 %v1156
    %1166 = vmatprep.subr.bf16.mxu0 0
    %1167 = vmatpush1.bf16.msra.mxu0 0
    %1168 = vmatprep.subr.bf16.mxu0 0
    %1169 = vmatpush1.bf16.msra.mxu0 0
    %1170 = vmatprep.subr.bf16.mxu0 0
    %1171 = vmatpush1.bf16.msra.mxu0 0
    %1172 = vmatprep.subr.bf16.mxu0 0
    %1173 = vmatpush1.bf16.msra.mxu0 0
    %1174 = vmatprep.subr.bf16.mxu0 0
    %1175 = vmatpush1.bf16.msra.mxu0 0
    %1176 = vmatprep.subr.bf16.mxu0 0
    %1177 = vmatpush1.bf16.msra.mxu0 0
    %1178 = vmatprep.subr.bf16.mxu0 0
    %1179 = vmatpush1.bf16.msra.mxu0 0
    %1180 = vmatprep.subr.bf16.mxu0 0
    %1181 = vmatpush1.bf16.msra.mxu0 0
    %1182 = vmatprep.subr.bf16.mxu0 0
    %1183 = vmatpush1.bf16.msra.mxu0 0
    %1184 = vmatprep.subr.bf16.mxu0 0
    %1185 = vmatpush1.bf16.msra.mxu0 0
    %1186 = vmatprep.subr.bf16.mxu0 0
    %1187 = vmatpush1.bf16.msra.mxu0 0
    %1188 = vmatprep.subr.bf16.mxu0 0
    %1189 = vmatpush1.bf16.msra.mxu0 0
    %1190 = vmatprep.subr.bf16.mxu0 0
    %1191 = vmatpush1.bf16.msra.mxu0 0
    %1192 = vmatprep.subr.bf16.mxu0 0
    %1193 = vmatpush1.bf16.msra.mxu0 0
    %1194 = vmatprep.mubr.bf16.mxu0 0
    %1195 = vmatmul.mubr.bf16.gmra.mrb[0].mxu0 %v1160
    %v1196 = vpop.f32.mrb[0].mxu0
    %v1197 = vadd.f32 %v1139, %v1196
    %v1198 = vpop.f32.mrb[0].mxu0
    %v1199 = vpop.f32.mrb[0].mxu0
    %v1200 = vpop.f32.mrb[0].mxu0
    %1201 = vdwg.mxu0
    %v1202 = vpack.c.bf16 %v1077, %v1077
    %v1204 = vrot.slane %v1202, 1
    %1205 = vrot.lane.b32.xlu0 %v1204, 64
    %v1206 = vpop.permute.xlu0 %1205
    %v1208 = vsel %vm183, %v1206, 0
    %1210 = vmatprep.subr.bf16.mxu0 0
    %1211 = vmatpush1.bf16.msra.mxu0 %v925
    %1212 = vmatprep.subr.bf16.mxu0 0
    %1213 = vmatpush1.bf16.msra.mxu0 %v926
    %1214 = vmatprep.subr.bf16.mxu0 0
    %1215 = vmatpush1.bf16.msra.mxu0 0
    %1216 = vmatprep.subr.bf16.mxu0 0
    %1217 = vmatpush1.bf16.msra.mxu0 0
    %1218 = vmatprep.subr.bf16.mxu0 0
    %1219 = vmatpush1.bf16.msra.mxu0 0
    %1220 = vmatprep.subr.bf16.mxu0 0
    %1221 = vmatpush1.bf16.msra.mxu0 0
    %1222 = vmatprep.subr.bf16.mxu0 0
    %1223 = vmatpush1.bf16.msra.mxu0 0
    %1224 = vmatprep.subr.bf16.mxu0 0
    %1225 = vmatpush1.bf16.msra.mxu0 0
    %1226 = vmatprep.subr.bf16.mxu0 0
    %1227 = vmatpush1.bf16.msra.mxu0 0
    %1228 = vmatprep.subr.bf16.mxu0 0
    %1229 = vmatpush1.bf16.msra.mxu0 0
    %1230 = vmatprep.subr.bf16.mxu0 0
    %1231 = vmatpush1.bf16.msra.mxu0 0
    %1232 = vmatprep.subr.bf16.mxu0 0
    %1233 = vmatpush1.bf16.msra.mxu0 0
    %1234 = vmatprep.subr.bf16.mxu0 0
    %1235 = vmatpush1.bf16.msra.mxu0 0
    %1236 = vmatprep.subr.bf16.mxu0 0
    %1237 = vmatpush1.bf16.msra.mxu0 0
    %1238 = vmatprep.subr.bf16.mxu0 0
    %1239 = vmatpush1.bf16.msra.mxu0 0
    %1240 = vmatprep.subr.bf16.mxu0 0
    %1241 = vmatpush1.bf16.msra.mxu0 0
    %1242 = vmatprep.mubr.bf16.mxu0 0
    %1243 = vmatmul.mubr.bf16.gmra.mrb[0].mxu0 %v1208
    %v1244 = vpop.f32.mrb[0].mxu0
    %v1245 = vadd.f32 0.0, %v1244
    %v1246 = vpop.f32.mrb[0].mxu0
    %v1247 = vpop.f32.mrb[0].mxu0
    %v1248 = vpop.f32.mrb[0].mxu0
    %1249 = vdwg.mxu0
    %v1251 = vrot.slane %v1245, 4
    %v1253 = vadd.f32 %v911, %v1251
    %v1254 = vxor.u32 %v1253, 2147483648
    %v1255 = vmul.f32 %v1254, 1.442695
    %v1256 = vpow.pop %v1255
    %v1257 = vadd.f32 %v1256, 1.0
    %v1258 = vrcp.pop %v1257
    %v1259 = vmul.f32 1.0, %v1258
    %v1260 = vtanh.pop %v1253
    %v1262 = vrot.slane %v1071, 6
    %v1264 = vmul.f32 %v1259, %v1262
    %1266 = vrot.lane.b32.xlu0 %v1260, 32
    %v1267 = vpop.permute.xlu0 %1266
    %v1269 = vmul.f32 %v1259, %v1267
    %1271 = vrot.lane.b32.xlu0 %v1269, 32
    %v1272 = vpop.permute.xlu0 %1271
    %v1274 = vadd.f32 %v1264, %v1272
    %v1275 = vtanh.pop %v1274
    %1277 = vrot.lane.b32.xlu0 %v1275, 32
    %v1278 = vpop.permute.xlu0 %1277
    %v1280 = vmul.f32 %v1259, %v1278
    %v1281 = vmax.f32 %v1280, 0.0
    %v1282 = vpack.c.bf16 %v1281, %v1281
    %s1283 = scalar_lea.vmem [#allocation9], 32
    %v1284 = vld [vmem:[%s1283] sm:$0xf]
    %v1285 = vld [vmem:[%s1283 + $0x4] sm:$0xf]
    %v1286 = vld [vmem:[%s1283 + $0x8] sm:$0xf]
    %v1287 = vld [vmem:[%s1283 + $0xc] sm:$0xf]
    %v1289 = vrot.slane %v1282, 2
    %1290 = vrot.lane.b32.xlu0 %v1289, 64
    %v1291 = vpop.permute.xlu0 %1290
    %v1296 = vunpack.c.l.b16 %v1284
    %v1297 = vunpack.c.l.b16 %v1285
    %v1298 = vunpack.c.l.b16 %v1286
    %v1299 = vunpack.c.l.b16 %v1287
    %v1300 = vpack.c.b16 %v1297, %v1296
    %v1301 = vpack.c.b16 %v1299, %v1298
    %v1305 = vsel %vm183, %v1291, 0
    %1307 = vmatprep.subr.bf16.mxu0 0
    %1308 = vmatpush1.bf16.msra.mxu0 %v1300
    %1309 = vmatprep.subr.bf16.mxu0 0
    %1310 = vmatpush1.bf16.msra.mxu0 %v1301
    %1311 = vmatprep.subr.bf16.mxu0 0
    %1312 = vmatpush1.bf16.msra.mxu0 0
    %1313 = vmatprep.subr.bf16.mxu0 0
    %1314 = vmatpush1.bf16.msra.mxu0 0
    %1315 = vmatprep.subr.bf16.mxu0 0
    %1316 = vmatpush1.bf16.msra.mxu0 0
    %1317 = vmatprep.subr.bf16.mxu0 0
    %1318 = vmatpush1.bf16.msra.mxu0 0
    %1319 = vmatprep.subr.bf16.mxu0 0
    %1320 = vmatpush1.bf16.msra.mxu0 0
    %1321 = vmatprep.subr.bf16.mxu0 0
    %1322 = vmatpush1.bf16.msra.mxu0 0
    %1323 = vmatprep.subr.bf16.mxu0 0
    %1324 = vmatpush1.bf16.msra.mxu0 0
    %1325 = vmatprep.subr.bf16.mxu0 0
    %1326 = vmatpush1.bf16.msra.mxu0 0
    %1327 = vmatprep.subr.bf16.mxu0 0
    %1328 = vmatpush1.bf16.msra.mxu0 0
    %1329 = vmatprep.subr.bf16.mxu0 0
    %1330 = vmatpush1.bf16.msra.mxu0 0
    %1331 = vmatprep.subr.bf16.mxu0 0
    %1332 = vmatpush1.bf16.msra.mxu0 0
    %1333 = vmatprep.subr.bf16.mxu0 0
    %1334 = vmatpush1.bf16.msra.mxu0 0
    %1335 = vmatprep.subr.bf16.mxu0 0
    %1336 = vmatpush1.bf16.msra.mxu0 0
    %1337 = vmatprep.subr.bf16.mxu0 0
    %1338 = vmatpush1.bf16.msra.mxu0 0
    %1339 = vmatprep.mubr.bf16.mxu0 0
    %1340 = vmatmul.mubr.bf16.gmra.mrb[0].mxu0 %v1305
    %v1341 = vpop.f32.mrb[0].mxu0
    %v1342 = vadd.f32 0.0, %v1341
    %v1343 = vpop.f32.mrb[0].mxu0
    %v1344 = vpop.f32.mrb[0].mxu0
    %v1345 = vpop.f32.mrb[0].mxu0
    %1346 = vdwg.mxu0
    %v1347 = vadd.f32 %v1197, %v1342
    %v1348 = vpack.c.bf16 %v1280, %v1280
    %v1350 = vrot.slane %v1348, 2
    %1351 = vrot.lane.b32.xlu0 %v1350, 64
    %v1352 = vpop.permute.xlu0 %1351
    %v1354 = vsel %vm183, %v1352, 0
    %1356 = vmatprep.subr.bf16.mxu0 0
    %1357 = vmatpush1.bf16.msra.mxu0 %v925
    %1358 = vmatprep.subr.bf16.mxu0 0
    %1359 = vmatpush1.bf16.msra.mxu0 %v926
    %1360 = vmatprep.subr.bf16.mxu0 0
    %1361 = vmatpush1.bf16.msra.mxu0 0
    %1362 = vmatprep.subr.bf16.mxu0 0
    %1363 = vmatpush1.bf16.msra.mxu0 0
    %1364 = vmatprep.subr.bf16.mxu0 0
    %1365 = vmatpush1.bf16.msra.mxu0 0
    %1366 = vmatprep.subr.bf16.mxu0 0
    %1367 = vmatpush1.bf16.msra.mxu0 0
    %1368 = vmatprep.subr.bf16.mxu0 0
    %1369 = vmatpush1.bf16.msra.mxu0 0
    %1370 = vmatprep.subr.bf16.mxu0 0
    %1371 = vmatpush1.bf16.msra.mxu0 0
    %1372 = vmatprep.subr.bf16.mxu0 0
    %1373 = vmatpush1.bf16.msra.mxu0 0
    %1374 = vmatprep.subr.bf16.mxu0 0
    %1375 = vmatpush1.bf16.msra.mxu0 0
    %1376 = vmatprep.subr.bf16.mxu0 0
    %1377 = vmatpush1.bf16.msra.mxu0 0
    %1378 = vmatprep.subr.bf16.mxu0 0
    %1379 = vmatpush1.bf16.msra.mxu0 0
    %1380 = vmatprep.subr.bf16.mxu0 0
    %1381 = vmatpush1.bf16.msra.mxu0 0
    %1382 = vmatprep.subr.bf16.mxu0 0
    %1383 = vmatpush1.bf16.msra.mxu0 0
    %1384 = vmatprep.subr.bf16.mxu0 0
    %1385 = vmatpush1.bf16.msra.mxu0 0
    %1386 = vmatprep.subr.bf16.mxu0 0
    %1387 = vmatpush1.bf16.msra.mxu0 0
    %1388 = vmatprep.mubr.bf16.mxu0 0
    %1389 = vmatmul.mubr.bf16.gmra.mrb[0].mxu0 %v1354
    %v1390 = vpop.f32.mrb[0].mxu0
    %v1391 = vadd.f32 0.0, %v1390
    %v1392 = vpop.f32.mrb[0].mxu0
    %v1393 = vpop.f32.mrb[0].mxu0
    %v1394 = vpop.f32.mrb[0].mxu0
    %1395 = vdwg.mxu0
    %v1397 = vrot.slane %v1391, 2
    %v1399 = vadd.f32 %v911, %v1397
    %v1400 = vxor.u32 %v1399, 2147483648
    %v1401 = vmul.f32 %v1400, 1.442695
    %v1402 = vpow.pop %v1401
    %v1403 = vadd.f32 %v1402, 1.0
    %v1404 = vrcp.pop %v1403
    %v1405 = vmul.f32 1.0, %v1404
    %v1406 = vtanh.pop %v1399
    %v1408 = vrot.slane %v1274, 6
    %v1410 = vmul.f32 %v1405, %v1408
    %1412 = vrot.lane.b32.xlu0 %v1406, 32
    %v1413 = vpop.permute.xlu0 %1412
    %v1415 = vmul.f32 %v1405, %v1413
    %1417 = vrot.lane.b32.xlu0 %v1415, 32
    %v1418 = vpop.permute.xlu0 %1417
    %v1420 = vadd.f32 %v1410, %v1418
    %v1421 = vtanh.pop %v1420
    %1423 = vrot.lane.b32.xlu0 %v1421, 32
    %v1424 = vpop.permute.xlu0 %1423
    %v1426 = vmul.f32 %v1405, %v1424
    %v1427 = vmax.f32 %v1426, 0.0
    %v1428 = vpack.c.bf16 %v1427, %v1427
    %s1429 = scalar_lea.vmem [#allocation9], 48
    %v1430 = vld [vmem:[%s1429] sm:$0xf]
    %v1431 = vld [vmem:[%s1429 + $0x4] sm:$0xf]
    %v1432 = vld [vmem:[%s1429 + $0x8] sm:$0xf]
    %v1433 = vld [vmem:[%s1429 + $0xc] sm:$0xf]
    %v1435 = vrot.slane %v1428, 3
    %1436 = vrot.lane.b32.xlu0 %v1435, 64
    %v1437 = vpop.permute.xlu0 %1436
    %v1442 = vunpack.c.l.b16 %v1430
    %v1443 = vunpack.c.l.b16 %v1431
    %v1444 = vunpack.c.l.b16 %v1432
    %v1445 = vunpack.c.l.b16 %v1433
    %v1446 = vpack.c.b16 %v1443, %v1442
    %v1447 = vpack.c.b16 %v1445, %v1444
    %v1451 = vsel %vm183, %v1437, 0
    %1453 = vmatprep.subr.bf16.mxu0 0
    %1454 = vmatpush1.bf16.msra.mxu0 %v1446
    %1455 = vmatprep.subr.bf16.mxu0 0
    %1456 = vmatpush1.bf16.msra.mxu0 %v1447
    %1457 = vmatprep.subr.bf16.mxu0 0
    %1458 = vmatpush1.bf16.msra.mxu0 0
    %1459 = vmatprep.subr.bf16.mxu0 0
    %1460 = vmatpush1.bf16.msra.mxu0 0
    %1461 = vmatprep.subr.bf16.mxu0 0
    %1462 = vmatpush1.bf16.msra.mxu0 0
    %1463 = vmatprep.subr.bf16.mxu0 0
    %1464 = vmatpush1.bf16.msra.mxu0 0
    %1465 = vmatprep.subr.bf16.mxu0 0
    %1466 = vmatpush1.bf16.msra.mxu0 0
    %1467 = vmatprep.subr.bf16.mxu0 0
    %1468 = vmatpush1.bf16.msra.mxu0 0
    %1469 = vmatprep.subr.bf16.mxu0 0
    %1470 = vmatpush1.bf16.msra.mxu0 0
    %1471 = vmatprep.subr.bf16.mxu0 0
    %1472 = vmatpush1.bf16.msra.mxu0 0
    %1473 = vmatprep.subr.bf16.mxu0 0
    %1474 = vmatpush1.bf16.msra.mxu0 0
    %1475 = vmatprep.subr.bf16.mxu0 0
    %1476 = vmatpush1.bf16.msra.mxu0 0
    %1477 = vmatprep.subr.bf16.mxu0 0
    %1478 = vmatpush1.bf16.msra.mxu0 0
    %1479 = vmatprep.subr.bf16.mxu0 0
    %1480 = vmatpush1.bf16.msra.mxu0 0
    %1481 = vmatprep.subr.bf16.mxu0 0
    %1482 = vmatpush1.bf16.msra.mxu0 0
    %1483 = vmatprep.subr.bf16.mxu0 0
    %1484 = vmatpush1.bf16.msra.mxu0 0
    %1485 = vmatprep.mubr.bf16.mxu0 0
    %1486 = vmatmul.mubr.bf16.gmra.mrb[0].mxu0 %v1451
    %v1487 = vpop.f32.mrb[0].mxu0
    %v1488 = vadd.f32 0.0, %v1487
    %v1489 = vpop.f32.mrb[0].mxu0
    %v1490 = vpop.f32.mrb[0].mxu0
    %v1491 = vpop.f32.mrb[0].mxu0
    %1492 = vdwg.mxu0
    %v1493 = vadd.f32 %v1347, %v1488
    %v1494 = vpack.c.bf16 %v1426, %v1426
    %v1496 = vrot.slane %v1494, 3
    %1497 = vrot.lane.b32.xlu0 %v1496, 64
    %v1498 = vpop.permute.xlu0 %1497
    %v1500 = vsel %vm183, %v1498, 0
    %1502 = vmatprep.subr.bf16.mxu0 0
    %1503 = vmatpush1.bf16.msra.mxu0 %v925
    %1504 = vmatprep.subr.bf16.mxu0 0
    %1505 = vmatpush1.bf16.msra.mxu0 %v926
    %1506 = vmatprep.subr.bf16.mxu0 0
    %1507 = vmatpush1.bf16.msra.mxu0 0
    %1508 = vmatprep.subr.bf16.mxu0 0
    %1509 = vmatpush1.bf16.msra.mxu0 0
    %1510 = vmatprep.subr.bf16.mxu0 0
    %1511 = vmatpush1.bf16.msra.mxu0 0
    %1512 = vmatprep.subr.bf16.mxu0 0
    %1513 = vmatpush1.bf16.msra.mxu0 0
    %1514 = vmatprep.subr.bf16.mxu0 0
    %1515 = vmatpush1.bf16.msra.mxu0 0
    %1516 = vmatprep.subr.bf16.mxu0 0
    %1517 = vmatpush1.bf16.msra.mxu0 0
    %1518 = vmatprep.subr.bf16.mxu0 0
    %1519 = vmatpush1.bf16.msra.mxu0 0
    %1520 = vmatprep.subr.bf16.mxu0 0
    %1521 = vmatpush1.bf16.msra.mxu0 0
    %1522 = vmatprep.subr.bf16.mxu0 0
    %1523 = vmatpush1.bf16.msra.mxu0 0
    %1524 = vmatprep.subr.bf16.mxu0 0
    %1525 = vmatpush1.bf16.msra.mxu0 0
    %1526 = vmatprep.subr.bf16.mxu0 0
    %1527 = vmatpush1.bf16.msra.mxu0 0
    %1528 = vmatprep.subr.bf16.mxu0 0
    %1529 = vmatpush1.bf16.msra.mxu0 0
    %1530 = vmatprep.subr.bf16.mxu0 0
    %1531 = vmatpush1.bf16.msra.mxu0 0
    %1532 = vmatprep.subr.bf16.mxu0 0
    %1533 = vmatpush1.bf16.msra.mxu0 0
    %1534 = vmatprep.mubr.bf16.mxu0 0
    %1535 = vmatmul.mubr.bf16.gmra.mrb[0].mxu0 %v1500
    %v1536 = vpop.f32.mrb[0].mxu0
    %v1537 = vadd.f32 0.0, %v1536
    %v1538 = vpop.f32.mrb[0].mxu0
    %v1539 = vpop.f32.mrb[0].mxu0
    %v1540 = vpop.f32.mrb[0].mxu0
    %1541 = vdwg.mxu0
    %v1542 = vadd.f32 %v914, %v1537
    %v1543 = vxor.u32 %v1542, 2147483648
    %v1544 = vmul.f32 %v1543, 1.442695
    %v1545 = vpow.pop %v1544
    %v1546 = vadd.f32 %v1545, 1.0
    %v1547 = vrcp.pop %v1546
    %v1548 = vmul.f32 1.0, %v1547
    %v1549 = vtanh.pop %v1542
    %v1551 = vrot.slane %v1420, 6
    %v1553 = vmul.f32 %v1548, %v1551
    %1555 = vrot.lane.b32.xlu0 %v1549, 32
    %v1556 = vpop.permute.xlu0 %1555
    %v1558 = vmul.f32 %v1548, %v1556
    %1560 = vrot.lane.b32.xlu0 %v1558, 32
    %v1561 = vpop.permute.xlu0 %1560
    %v1563 = vadd.f32 %v1553, %v1561
    %v1564 = vtanh.pop %v1563
    %1566 = vrot.lane.b32.xlu0 %v1564, 32
    %v1567 = vpop.permute.xlu0 %1566
    %v1569 = vmul.f32 %v1548, %v1567
    %v1570 = vmax.f32 %v1569, 0.0
    %v1571 = vpack.c.bf16 %v1570, %v1570
    %s1572 = scalar_lea.vmem [#allocation9], 64
    %v1573 = vld [vmem:[%s1572] sm:$0xf]
    %v1574 = vld [vmem:[%s1572 + $0x4] sm:$0xf]
    %v1575 = vld [vmem:[%s1572 + $0x8] sm:$0xf]
    %v1576 = vld [vmem:[%s1572 + $0xc] sm:$0xf]
    %1578 = vrot.lane.b32.xlu0 %v1571, 64
    %v1579 = vpop.permute.xlu0 %1578
    %v1584 = vunpack.c.l.b16 %v1573
    %v1585 = vunpack.c.l.b16 %v1574
    %v1586 = vunpack.c.l.b16 %v1575
    %v1587 = vunpack.c.l.b16 %v1576
    %v1588 = vpack.c.b16 %v1585, %v1584
    %v1589 = vpack.c.b16 %v1587, %v1586
    %v1593 = vsel %vm183, %v1579, 0
    %1595 = vmatprep.subr.bf16.mxu0 0
    %1596 = vmatpush1.bf16.msra.mxu0 %v1588
    %1597 = vmatprep.subr.bf16.mxu0 0
    %1598 = vmatpush1.bf16.msra.mxu0 %v1589
    %1599 = vmatprep.subr.bf16.mxu0 0
    %1600 = vmatpush1.bf16.msra.mxu0 0
    %1601 = vmatprep.subr.bf16.mxu0 0
    %1602 = vmatpush1.bf16.msra.mxu0 0
    %1603 = vmatprep.subr.bf16.mxu0 0
    %1604 = vmatpush1.bf16.msra.mxu0 0
    %1605 = vmatprep.subr.bf16.mxu0 0
    %1606 = vmatpush1.bf16.msra.mxu0 0
    %1607 = vmatprep.subr.bf16.mxu0 0
    %1608 = vmatpush1.bf16.msra.mxu0 0
    %1609 = vmatprep.subr.bf16.mxu0 0
    %1610 = vmatpush1.bf16.msra.mxu0 0
    %1611 = vmatprep.subr.bf16.mxu0 0
    %1612 = vmatpush1.bf16.msra.mxu0 0
    %1613 = vmatprep.subr.bf16.mxu0 0
    %1614 = vmatpush1.bf16.msra.mxu0 0
    %1615 = vmatprep.subr.bf16.mxu0 0
    %1616 = vmatpush1.bf16.msra.mxu0 0
    %1617 = vmatprep.subr.bf16.mxu0 0
    %1618 = vmatpush1.bf16.msra.mxu0 0
    %1619 = vmatprep.subr.bf16.mxu0 0
    %1620 = vmatpush1.bf16.msra.mxu0 0
    %1621 = vmatprep.subr.bf16.mxu0 0
    %1622 = vmatpush1.bf16.msra.mxu0 0
    %1623 = vmatprep.subr.bf16.mxu0 0
    %1624 = vmatpush1.bf16.msra.mxu0 0
    %1625 = vmatprep.subr.bf16.mxu0 0
    %1626 = vmatpush1.bf16.msra.mxu0 0
    %1627 = vmatprep.mubr.bf16.mxu0 0
    %1628 = vmatmul.mubr.bf16.gmra.mrb[0].mxu0 %v1593
    %v1629 = vpop.f32.mrb[0].mxu0
    %v1630 = vadd.f32 0.0, %v1629
    %v1631 = vpop.f32.mrb[0].mxu0
    %v1632 = vpop.f32.mrb[0].mxu0
    %v1633 = vpop.f32.mrb[0].mxu0
    %1634 = vdwg.mxu0
    %v1635 = vadd.f32 %v1493, %v1630
    %v1636 = vpack.c.bf16 %v1569, %v1569
    %1638 = vrot.lane.b32.xlu0 %v1636, 64
    %v1639 = vpop.permute.xlu0 %1638
    %v1641 = vsel %vm183, %v1639, 0
    %1643 = vmatprep.subr.bf16.mxu0 0
    %1644 = vmatpush1.bf16.msra.mxu0 %v925
    %1645 = vmatprep.subr.bf16.mxu0 0
    %1646 = vmatpush1.bf16.msra.mxu0 %v926
    %1647 = vmatprep.subr.bf16.mxu0 0
    %1648 = vmatpush1.bf16.msra.mxu0 0
    %1649 = vmatprep.subr.bf16.mxu0 0
    %1650 = vmatpush1.bf16.msra.mxu0 0
    %1651 = vmatprep.subr.bf16.mxu0 0
    %1652 = vmatpush1.bf16.msra.mxu0 0
    %1653 = vmatprep.subr.bf16.mxu0 0
    %1654 = vmatpush1.bf16.msra.mxu0 0
    %1655 = vmatprep.subr.bf16.mxu0 0
    %1656 = vmatpush1.bf16.msra.mxu0 0
    %1657 = vmatprep.subr.bf16.mxu0 0
    %1658 = vmatpush1.bf16.msra.mxu0 0
    %1659 = vmatprep.subr.bf16.mxu0 0
    %1660 = vmatpush1.bf16.msra.mxu0 0
    %1661 = vmatprep.subr.bf16.mxu0 0
    %1662 = vmatpush1.bf16.msra.mxu0 0
    %1663 = vmatprep.subr.bf16.mxu0 0
    %1664 = vmatpush1.bf16.msra.mxu0 0
    %1665 = vmatprep.subr.bf16.mxu0 0
    %1666 = vmatpush1.bf16.msra.mxu0 0
    %1667 = vmatprep.subr.bf16.mxu0 0
    %1668 = vmatpush1.bf16.msra.mxu0 0
    %1669 = vmatprep.subr.bf16.mxu0 0
    %1670 = vmatpush1.bf16.msra.mxu0 0
    %1671 = vmatprep.subr.bf16.mxu0 0
    %1672 = vmatpush1.bf16.msra.mxu0 0
    %1673 = vmatprep.subr.bf16.mxu0 0
    %1674 = vmatpush1.bf16.msra.mxu0 0
    %1675 = vmatprep.mubr.bf16.mxu0 0
    %1676 = vmatmul.mubr.bf16.gmra.mrb[0].mxu0 %v1641
    %v1677 = vpop.f32.mrb[0].mxu0
    %v1678 = vadd.f32 0.0, %v1677
    %v1679 = vpop.f32.mrb[0].mxu0
    %v1680 = vpop.f32.mrb[0].mxu0
    %v1681 = vpop.f32.mrb[0].mxu0
    %1682 = vdwg.mxu0
    %v1684 = vrot.slane %v1678, 6
    %v1686 = vadd.f32 %v914, %v1684
    %v1687 = vxor.u32 %v1686, 2147483648
    %v1688 = vmul.f32 %v1687, 1.442695
    %v1689 = vpow.pop %v1688
    %v1690 = vadd.f32 %v1689, 1.0
    %v1691 = vrcp.pop %v1690
    %v1692 = vmul.f32 1.0, %v1691
    %v1693 = vtanh.pop %v1686
    %v1695 = vrot.slane %v1563, 6
    %v1697 = vmul.f32 %v1692, %v1695
    %1699 = vrot.lane.b32.xlu0 %v1693, 32
    %v1700 = vpop.permute.xlu0 %1699
    %v1702 = vmul.f32 %v1692, %v1700
    %1704 = vrot.lane.b32.xlu0 %v1702, 32
    %v1705 = vpop.permute.xlu0 %1704
    %v1707 = vadd.f32 %v1697, %v1705
    %v1708 = vtanh.pop %v1707
    %1710 = vrot.lane.b32.xlu0 %v1708, 32
    %v1711 = vpop.permute.xlu0 %1710
    %v1713 = vmul.f32 %v1692, %v1711
    %v1714 = vmax.f32 %v1713, 0.0
    %v1715 = vpack.c.bf16 %v1714, %v1714
    %s1716 = scalar_lea.vmem [#allocation9], 80
    %v1717 = vld [vmem:[%s1716] sm:$0xf]
    %v1718 = vld [vmem:[%s1716 + $0x4] sm:$0xf]
    %v1719 = vld [vmem:[%s1716 + $0x8] sm:$0xf]
    %v1720 = vld [vmem:[%s1716 + $0xc] sm:$0xf]
    %v1722 = vrot.slane %v1715, 1
    %1723 = vrot.lane.b32.xlu0 %v1722, 64
    %v1724 = vpop.permute.xlu0 %1723
    %v1729 = vunpack.c.l.b16 %v1717
    %v1730 = vunpack.c.l.b16 %v1718
    %v1731 = vunpack.c.l.b16 %v1719
    %v1732 = vunpack.c.l.b16 %v1720
    %v1733 = vpack.c.b16 %v1730, %v1729
    %v1734 = vpack.c.b16 %v1732, %v1731
    %v1738 = vsel %vm183, %v1724, 0
    %1740 = vmatprep.subr.bf16.mxu0 0
    %1741 = vmatpush1.bf16.msra.mxu0 %v1733
    %1742 = vmatprep.subr.bf16.mxu0 0
    %1743 = vmatpush1.bf16.msra.mxu0 %v1734
    %1744 = vmatprep.subr.bf16.mxu0 0
    %1745 = vmatpush1.bf16.msra.mxu0 0
    %1746 = vmatprep.subr.bf16.mxu0 0
    %1747 = vmatpush1.bf16.msra.mxu0 0
    %1748 = vmatprep.subr.bf16.mxu0 0
    %1749 = vmatpush1.bf16.msra.mxu0 0
    %1750 = vmatprep.subr.bf16.mxu0 0
    %1751 = vmatpush1.bf16.msra.mxu0 0
    %1752 = vmatprep.subr.bf16.mxu0 0
    %1753 = vmatpush1.bf16.msra.mxu0 0
    %1754 = vmatprep.subr.bf16.mxu0 0
    %1755 = vmatpush1.bf16.msra.mxu0 0
    %1756 = vmatprep.subr.bf16.mxu0 0
    %1757 = vmatpush1.bf16.msra.mxu0 0
    %1758 = vmatprep.subr.bf16.mxu0 0
    %1759 = vmatpush1.bf16.msra.mxu0 0
    %1760 = vmatprep.subr.bf16.mxu0 0
    %1761 = vmatpush1.bf16.msra.mxu0 0
    %1762 = vmatprep.subr.bf16.mxu0 0
    %1763 = vmatpush1.bf16.msra.mxu0 0
    %1764 = vmatprep.subr.bf16.mxu0 0
    %1765 = vmatpush1.bf16.msra.mxu0 0
    %1766 = vmatprep.subr.bf16.mxu0 0
    %1767 = vmatpush1.bf16.msra.mxu0 0
    %1768 = vmatprep.subr.bf16.mxu0 0
    %1769 = vmatpush1.bf16.msra.mxu0 0
    %1770 = vmatprep.subr.bf16.mxu0 0
    %1771 = vmatpush1.bf16.msra.mxu0 0
    %1772 = vmatprep.mubr.bf16.mxu0 0
    %1773 = vmatmul.mubr.bf16.gmra.mrb[0].mxu0 %v1738
    %v1774 = vpop.f32.mrb[0].mxu0
    %v1775 = vadd.f32 0.0, %v1774
    %v1776 = vpop.f32.mrb[0].mxu0
    %v1777 = vpop.f32.mrb[0].mxu0
    %v1778 = vpop.f32.mrb[0].mxu0
    %1779 = vdwg.mxu0
    %v1780 = vadd.f32 %v1635, %v1775
    %v1781 = vpack.c.bf16 %v1713, %v1713
    %v1783 = vrot.slane %v1781, 1
    %1784 = vrot.lane.b32.xlu0 %v1783, 64
    %v1785 = vpop.permute.xlu0 %1784
    %v1787 = vsel %vm183, %v1785, 0
    %1789 = vmatprep.subr.bf16.mxu0 0
    %1790 = vmatpush1.bf16.msra.mxu0 %v925
    %1791 = vmatprep.subr.bf16.mxu0 0
    %1792 = vmatpush1.bf16.msra.mxu0 %v926
    %1793 = vmatprep.subr.bf16.mxu0 0
    %1794 = vmatpush1.bf16.msra.mxu0 0
    %1795 = vmatprep.subr.bf16.mxu0 0
    %1796 = vmatpush1.bf16.msra.mxu0 0
    %1797 = vmatprep.subr.bf16.mxu0 0
    %1798 = vmatpush1.bf16.msra.mxu0 0
    %1799 = vmatprep.subr.bf16.mxu0 0
    %1800 = vmatpush1.bf16.msra.mxu0 0
    %1801 = vmatprep.subr.bf16.mxu0 0
    %1802 = vmatpush1.bf16.msra.mxu0 0
    %1803 = vmatprep.subr.bf16.mxu0 0
    %1804 = vmatpush1.bf16.msra.mxu0 0
    %1805 = vmatprep.subr.bf16.mxu0 0
    %1806 = vmatpush1.bf16.msra.mxu0 0
    %1807 = vmatprep.subr.bf16.mxu0 0
    %1808 = vmatpush1.bf16.msra.mxu0 0
    %1809 = vmatprep.subr.bf16.mxu0 0
    %1810 = vmatpush1.bf16.msra.mxu0 0
    %1811 = vmatprep.subr.bf16.mxu0 0
    %1812 = vmatpush1.bf16.msra.mxu0 0
    %1813 = vmatprep.subr.bf16.mxu0 0
    %1814 = vmatpush1.bf16.msra.mxu0 0
    %1815 = vmatprep.subr.bf16.mxu0 0
    %1816 = vmatpush1.bf16.msra.mxu0 0
    %1817 = vmatprep.subr.bf16.mxu0 0
    %1818 = vmatpush1.bf16.msra.mxu0 0
    %1819 = vmatprep.subr.bf16.mxu0 0
    %1820 = vmatpush1.bf16.msra.mxu0 0
    %1821 = vmatprep.mubr.bf16.mxu0 0
    %1822 = vmatmul.mubr.bf16.gmra.mrb[0].mxu0 %v1787
    %v1823 = vpop.f32.mrb[0].mxu0
    %v1824 = vadd.f32 0.0, %v1823
    %v1825 = vpop.f32.mrb[0].mxu0
    %v1826 = vpop.f32.mrb[0].mxu0
    %v1827 = vpop.f32.mrb[0].mxu0
    %1828 = vdwg.mxu0
    %v1830 = vrot.slane %v1824, 4
    %v1832 = vadd.f32 %v914, %v1830
    %v1833 = vxor.u32 %v1832, 2147483648
    %v1834 = vmul.f32 %v1833, 1.442695
    %v1835 = vpow.pop %v1834
    %v1836 = vadd.f32 %v1835, 1.0
    %v1837 = vrcp.pop %v1836
    %v1838 = vmul.f32 1.0, %v1837
    %v1839 = vtanh.pop %v1832
    %v1841 = vrot.slane %v1707, 6
    %v1843 = vmul.f32 %v1838, %v1841
    %1845 = vrot.lane.b32.xlu0 %v1839, 32
    %v1846 = vpop.permute.xlu0 %1845
    %v1848 = vmul.f32 %v1838, %v1846
    %1850 = vrot.lane.b32.xlu0 %v1848, 32
    %v1851 = vpop.permute.xlu0 %1850
    %v1853 = vadd.f32 %v1843, %v1851
    %v1854 = vtanh.pop %v1853
    %1856 = vrot.lane.b32.xlu0 %v1854, 32
    %v1857 = vpop.permute.xlu0 %1856
    %v1859 = vmul.f32 %v1838, %v1857
    %v1860 = vmax.f32 %v1859, 0.0
    %v1861 = vpack.c.bf16 %v1860, %v1860
    %s1862 = scalar_lea.vmem [#allocation9], 96
    %v1863 = vld [vmem:[%s1862] sm:$0xf]
    %v1864 = vld [vmem:[%s1862 + $0x4] sm:$0xf]
    %v1865 = vld [vmem:[%s1862 + $0x8] sm:$0xf]
    %v1866 = vld [vmem:[%s1862 + $0xc] sm:$0xf]
    %v1868 = vrot.slane %v1861, 2
    %1869 = vrot.lane.b32.xlu0 %v1868, 64
    %v1870 = vpop.permute.xlu0 %1869
    %v1875 = vunpack.c.l.b16 %v1863
    %v1876 = vunpack.c.l.b16 %v1864
    %v1877 = vunpack.c.l.b16 %v1865
    %v1878 = vunpack.c.l.b16 %v1866
    %v1879 = vpack.c.b16 %v1876, %v1875
    %v1880 = vpack.c.b16 %v1878, %v1877
    %v1884 = vsel %vm183, %v1870, 0
    %1886 = vmatprep.subr.bf16.mxu0 0
    %1887 = vmatpush1.bf16.msra.mxu0 %v1879
    %1888 = vmatprep.subr.bf16.mxu0 0
    %1889 = vmatpush1.bf16.msra.mxu0 %v1880
    %1890 = vmatprep.subr.bf16.mxu0 0
    %1891 = vmatpush1.bf16.msra.mxu0 0
    %1892 = vmatprep.subr.bf16.mxu0 0
    %1893 = vmatpush1.bf16.msra.mxu0 0
    %1894 = vmatprep.subr.bf16.mxu0 0
    %1895 = vmatpush1.bf16.msra.mxu0 0
    %1896 = vmatprep.subr.bf16.mxu0 0
    %1897 = vmatpush1.bf16.msra.mxu0 0
    %1898 = vmatprep.subr.bf16.mxu0 0
    %1899 = vmatpush1.bf16.msra.mxu0 0
    %1900 = vmatprep.subr.bf16.mxu0 0
    %1901 = vmatpush1.bf16.msra.mxu0 0
    %1902 = vmatprep.subr.bf16.mxu0 0
    %1903 = vmatpush1.bf16.msra.mxu0 0
    %1904 = vmatprep.subr.bf16.mxu0 0
    %1905 = vmatpush1.bf16.msra.mxu0 0
    %1906 = vmatprep.subr.bf16.mxu0 0
    %1907 = vmatpush1.bf16.msra.mxu0 0
    %1908 = vmatprep.subr.bf16.mxu0 0
    %1909 = vmatpush1.bf16.msra.mxu0 0
    %1910 = vmatprep.subr.bf16.mxu0 0
    %1911 = vmatpush1.bf16.msra.mxu0 0
    %1912 = vmatprep.subr.bf16.mxu0 0
    %1913 = vmatpush1.bf16.msra.mxu0 0
    %1914 = vmatprep.subr.bf16.mxu0 0
    %1915 = vmatpush1.bf16.msra.mxu0 0
    %1916 = vmatprep.subr.bf16.mxu0 0
    %1917 = vmatpush1.bf16.msra.mxu0 0
    %1918 = vmatprep.mubr.bf16.mxu0 0
    %1919 = vmatmul.mubr.bf16.gmra.mrb[0].mxu0 %v1884
    %v1920 = vpop.f32.mrb[0].mxu0
    %v1921 = vadd.f32 0.0, %v1920
    %v1922 = vpop.f32.mrb[0].mxu0
    %v1923 = vpop.f32.mrb[0].mxu0
    %v1924 = vpop.f32.mrb[0].mxu0
    %1925 = vdwg.mxu0
    %v1926 = vadd.f32 %v1780, %v1921
    %v1927 = vpack.c.bf16 %v1859, %v1859
    %v1929 = vrot.slane %v1927, 2
    %1930 = vrot.lane.b32.xlu0 %v1929, 64
    %v1931 = vpop.permute.xlu0 %1930
    %v1933 = vsel %vm183, %v1931, 0
    %1935 = vmatprep.subr.bf16.mxu0 0
    %1936 = vmatpush1.bf16.msra.mxu0 %v925
    %1937 = vmatprep.subr.bf16.mxu0 0
    %1938 = vmatpush1.bf16.msra.mxu0 %v926
    %1939 = vmatprep.subr.bf16.mxu0 0
    %1940 = vmatpush1.bf16.msra.mxu0 0
    %1941 = vmatprep.subr.bf16.mxu0 0
    %1942 = vmatpush1.bf16.msra.mxu0 0
    %1943 = vmatprep.subr.bf16.mxu0 0
    %1944 = vmatpush1.bf16.msra.mxu0 0
    %1945 = vmatprep.subr.bf16.mxu0 0
    %1946 = vmatpush1.bf16.msra.mxu0 0
    %1947 = vmatprep.subr.bf16.mxu0 0
    %1948 = vmatpush1.bf16.msra.mxu0 0
    %1949 = vmatprep.subr.bf16.mxu0 0
    %1950 = vmatpush1.bf16.msra.mxu0 0
    %1951 = vmatprep.subr.bf16.mxu0 0
    %1952 = vmatpush1.bf16.msra.mxu0 0
    %1953 = vmatprep.subr.bf16.mxu0 0
    %1954 = vmatpush1.bf16.msra.mxu0 0
    %1955 = vmatprep.subr.bf16.mxu0 0
    %1956 = vmatpush1.bf16.msra.mxu0 0
    %1957 = vmatprep.subr.bf16.mxu0 0
    %1958 = vmatpush1.bf16.msra.mxu0 0
    %1959 = vmatprep.subr.bf16.mxu0 0
    %1960 = vmatpush1.bf16.msra.mxu0 0
    %1961 = vmatprep.subr.bf16.mxu0 0
    %1962 = vmatpush1.bf16.msra.mxu0 0
    %1963 = vmatprep.subr.bf16.mxu0 0
    %1964 = vmatpush1.bf16.msra.mxu0 0
    %1965 = vmatprep.subr.bf16.mxu0 0
    %1966 = vmatpush1.bf16.msra.mxu0 0
    %1967 = vmatprep.mubr.bf16.mxu0 0
    %1968 = vmatmul.mubr.bf16.gmra.mrb[0].mxu0 %v1933
    %v1969 = vpop.f32.mrb[0].mxu0
    %v1970 = vadd.f32 0.0, %v1969
    %v1971 = vpop.f32.mrb[0].mxu0
    %v1972 = vpop.f32.mrb[0].mxu0
    %v1973 = vpop.f32.mrb[0].mxu0
    %1974 = vdwg.mxu0
    %v1976 = vrot.slane %v1970, 2
    %v1978 = vadd.f32 %v914, %v1976
    %v1979 = vxor.u32 %v1978, 2147483648
    %v1980 = vmul.f32 %v1979, 1.442695
    %v1981 = vpow.pop %v1980
    %v1982 = vadd.f32 %v1981, 1.0
    %v1983 = vrcp.pop %v1982
    %v1984 = vmul.f32 1.0, %v1983
    %v1985 = vtanh.pop %v1978
    %v1987 = vrot.slane %v1853, 6
    %v1989 = vmul.f32 %v1984, %v1987
    %1991 = vrot.lane.b32.xlu0 %v1985, 32
    %v1992 = vpop.permute.xlu0 %1991
    %v1994 = vmul.f32 %v1984, %v1992
    %1996 = vrot.lane.b32.xlu0 %v1994, 32
    %v1997 = vpop.permute.xlu0 %1996
    %v1999 = vadd.f32 %v1989, %v1997
    %v2000 = vtanh.pop %v1999
    %2002 = vrot.lane.b32.xlu0 %v2000, 32
    %v2003 = vpop.permute.xlu0 %2002
    %v2005 = vmul.f32 %v1984, %v2003
    %v2006 = vmax.f32 %v2005, 0.0
    %v2007 = vpack.c.bf16 %v2006, %v2006
    %s2008 = scalar_lea.vmem [#allocation9], 112
    %v2009 = vld [vmem:[%s2008] sm:$0xf]
    %v2010 = vld [vmem:[%s2008 + $0x4] sm:$0xf]
    %v2011 = vld [vmem:[%s2008 + $0x8] sm:$0xf]
    %v2012 = vld [vmem:[%s2008 + $0xc] sm:$0xf]
    %v2014 = vrot.slane %v2007, 3
    %2015 = vrot.lane.b32.xlu0 %v2014, 64
    %v2016 = vpop.permute.xlu0 %2015
    %v2021 = vunpack.c.l.b16 %v2009
    %v2022 = vunpack.c.l.b16 %v2010
    %v2023 = vunpack.c.l.b16 %v2011
    %v2024 = vunpack.c.l.b16 %v2012
    %v2025 = vpack.c.b16 %v2022, %v2021
    %v2026 = vpack.c.b16 %v2024, %v2023
    %v2030 = vsel %vm183, %v2016, 0
    %2032 = vmatprep.subr.bf16.mxu0 0
    %2033 = vmatpush1.bf16.msra.mxu0 %v2025
    %2034 = vmatprep.subr.bf16.mxu0 0
    %2035 = vmatpush1.bf16.msra.mxu0 %v2026
    %2036 = vmatprep.subr.bf16.mxu0 0
    %2037 = vmatpush1.bf16.msra.mxu0 0
    %2038 = vmatprep.subr.bf16.mxu0 0
    %2039 = vmatpush1.bf16.msra.mxu0 0
    %2040 = vmatprep.subr.bf16.mxu0 0
    %2041 = vmatpush1.bf16.msra.mxu0 0
    %2042 = vmatprep.subr.bf16.mxu0 0
    %2043 = vmatpush1.bf16.msra.mxu0 0
    %2044 = vmatprep.subr.bf16.mxu0 0
    %2045 = vmatpush1.bf16.msra.mxu0 0
    %2046 = vmatprep.subr.bf16.mxu0 0
    %2047 = vmatpush1.bf16.msra.mxu0 0
    %2048 = vmatprep.subr.bf16.mxu0 0
    %2049 = vmatpush1.bf16.msra.mxu0 0
    %2050 = vmatprep.subr.bf16.mxu0 0
    %2051 = vmatpush1.bf16.msra.mxu0 0
    %2052 = vmatprep.subr.bf16.mxu0 0
    %2053 = vmatpush1.bf16.msra.mxu0 0
    %2054 = vmatprep.subr.bf16.mxu0 0
    %2055 = vmatpush1.bf16.msra.mxu0 0
    %2056 = vmatprep.subr.bf16.mxu0 0
    %2057 = vmatpush1.bf16.msra.mxu0 0
    %2058 = vmatprep.subr.bf16.mxu0 0
    %2059 = vmatpush1.bf16.msra.mxu0 0
    %2060 = vmatprep.subr.bf16.mxu0 0
    %2061 = vmatpush1.bf16.msra.mxu0 0
    %2062 = vmatprep.subr.bf16.mxu0 0
    %2063 = vmatpush1.bf16.msra.mxu0 0
    %2064 = vmatprep.mubr.bf16.mxu0 0
    %2065 = vmatmul.mubr.bf16.gmra.mrb[0].mxu0 %v2030
    %v2066 = vpop.f32.mrb[0].mxu0
    %v2067 = vadd.f32 0.0, %v2066
    %v2068 = vpop.f32.mrb[0].mxu0
    %v2069 = vpop.f32.mrb[0].mxu0
    %v2070 = vpop.f32.mrb[0].mxu0
    %2071 = vdwg.mxu0
    %v2072 = vadd.f32 %v1926, %v2067
    %v2073 = vld [vmem:[%s7] sm:$0x1]
    %v2075 = vlaneseq
    %v2076 = vshrl.u32 %v2075, 7
    %v2077 = vsub.s32 0, %v2076
    %v2078 = vrot.slane %v2073, %v2077
    %v2080 = vadd.f32 %v2072, %v2078
    %v2081 = vmax.f32 %v2080, 0.0
    %v2082 = vpack.c.bf16 %v2081, %v2081
    %v2083 = vld [vmem:[#allocation11] sm:$0xf]
    %v2084 = vld [vmem:[#allocation11 + $0x4] sm:$0xf]
    %v2085 = vld [vmem:[#allocation11 + $0x8] sm:$0xf]
    %v2086 = vld [vmem:[#allocation11 + $0xc] sm:$0xf]
    %v2087 = vld [vmem:[#allocation11 + $0x10] sm:$0xf]
    %v2088 = vld [vmem:[#allocation11 + $0x14] sm:$0xf]
    %v2089 = vld [vmem:[#allocation11 + $0x18] sm:$0xf]
    %v2090 = vld [vmem:[#allocation11 + $0x1c] sm:$0xf]
    %v2091 = vld [vmem:[#allocation11 + $0x20] sm:$0xf]
    %v2092 = vld [vmem:[#allocation11 + $0x24] sm:$0xf]
    %v2093 = vld [vmem:[#allocation11 + $0x28] sm:$0xf]
    %v2094 = vld [vmem:[#allocation11 + $0x2c] sm:$0xf]
    %v2095 = vld [vmem:[#allocation11 + $0x30] sm:$0xf]
    %v2096 = vld [vmem:[#allocation11 + $0x34] sm:$0xf]
    %v2097 = vld [vmem:[#allocation11 + $0x38] sm:$0xf]
    %v2098 = vld [vmem:[#allocation11 + $0x3c] sm:$0xf]
    %v2099 = vld [vmem:[%s9] sm:$0x1]
    %v2101 = vlaneseq
    %v2102 = vshrl.u32 %v2101, 7
    %v2103 = vsub.s32 0, %v2102
    %v2104 = vrot.slane %v2099, %v2103
    %v2122 = vunpack.c.l.b16 %v2083
    %v2123 = vunpack.c.l.b16 %v2084
    %v2124 = vunpack.c.l.b16 %v2085
    %v2125 = vunpack.c.l.b16 %v2086
    %v2126 = vunpack.c.l.b16 %v2087
    %v2127 = vunpack.c.l.b16 %v2088
    %v2128 = vunpack.c.l.b16 %v2089
    %v2129 = vunpack.c.l.b16 %v2090
    %v2130 = vunpack.c.l.b16 %v2091
    %v2131 = vunpack.c.l.b16 %v2092
    %v2132 = vunpack.c.l.b16 %v2093
    %v2133 = vunpack.c.l.b16 %v2094
    %v2134 = vunpack.c.l.b16 %v2095
    %v2135 = vunpack.c.l.b16 %v2096
    %v2136 = vunpack.c.l.b16 %v2097
    %v2137 = vunpack.c.l.b16 %v2098
    %v2138 = vpack.c.b16 %v2123, %v2122
    %v2139 = vpack.c.b16 %v2125, %v2124
    %v2140 = vpack.c.b16 %v2127, %v2126
    %v2141 = vpack.c.b16 %v2129, %v2128
    %v2142 = vpack.c.b16 %v2131, %v2130
    %v2143 = vpack.c.b16 %v2133, %v2132
    %v2144 = vpack.c.b16 %v2135, %v2134
    %v2145 = vpack.c.b16 %v2137, %v2136
    %2154 = vmatprep.subr.bf16.mxu0 0
    %2155 = vmatpush1.bf16.msra.mxu0 %v2138
    %2156 = vmatprep.subr.bf16.mxu0 0
    %2157 = vmatpush1.bf16.msra.mxu0 %v2139
    %2158 = vmatprep.subr.bf16.mxu0 0
    %2159 = vmatpush1.bf16.msra.mxu0 %v2140
    %2160 = vmatprep.subr.bf16.mxu0 0
    %2161 = vmatpush1.bf16.msra.mxu0 %v2141
    %2162 = vmatprep.subr.bf16.mxu0 0
    %2163 = vmatpush1.bf16.msra.mxu0 %v2142
    %2164 = vmatprep.subr.bf16.mxu0 0
    %2165 = vmatpush1.bf16.msra.mxu0 %v2143
    %2166 = vmatprep.subr.bf16.mxu0 0
    %2167 = vmatpush1.bf16.msra.mxu0 %v2144
    %2168 = vmatprep.subr.bf16.mxu0 0
    %2169 = vmatpush1.bf16.msra.mxu0 %v2145
    %2170 = vmatprep.subr.bf16.mxu0 0
    %2171 = vmatpush1.bf16.msra.mxu0 0
    %2172 = vmatprep.subr.bf16.mxu0 0
    %2173 = vmatpush1.bf16.msra.mxu0 0
    %2174 = vmatprep.subr.bf16.mxu0 0
    %2175 = vmatpush1.bf16.msra.mxu0 0
    %2176 = vmatprep.subr.bf16.mxu0 0
    %2177 = vmatpush1.bf16.msra.mxu0 0
    %2178 = vmatprep.subr.bf16.mxu0 0
    %2179 = vmatpush1.bf16.msra.mxu0 0
    %2180 = vmatprep.subr.bf16.mxu0 0
    %2181 = vmatpush1.bf16.msra.mxu0 0
    %2182 = vmatprep.subr.bf16.mxu0 0
    %2183 = vmatpush1.bf16.msra.mxu0 0
    %2184 = vmatprep.subr.bf16.mxu0 0
    %2185 = vmatpush1.bf16.msra.mxu0 0
    %2186 = vmatprep.mubr.bf16.mxu0 0
    %2187 = vmatmul.mubr.bf16.gmra.mrb[0].mxu0 %v2082
    %v2188 = vpop.f32.mrb[0].mxu0
    %v2189 = vadd.f32 %v2104, %v2188
    %v2190 = vpop.f32.mrb[0].mxu0
    %v2191 = vpop.f32.mrb[0].mxu0
    %v2192 = vpop.f32.mrb[0].mxu0
    %2193 = vdwg.mxu0
    %2194 = vst [vmem:[#allocation12] sm:$0x3] %v2189
    // Predicated region
    $region62: #{tpu_custom_call.1} parent=1 // pred_check
      _
    $region63: #{tpu_custom_call.1} parent=1 // pred_check_branch
      %2196 = sbr.rel (0) target = $region65
    $region64: #{tpu_custom_call.1} parent=1 // pred_region
      %s2198 = ssub.s32 32, 32
      %2199 = vsyncadd [#allocation5], %s2198
      %s2201 = sshll.u32 [#allocation12], 4
      %s2202 = int_to_ptr.vmem [resolvable:$true] %s2201
      %2204 = dma.vmem_to_hbm [thread:$0]  %s2202, 32, %s10, [#allocation5]
    $region65: #{tpu_custom_call.1} parent=1 // pred_fallthru
      _
    // Predicated region
    $region66: #{tpu_custom_call.1} parent=1 // pred_check
      _
    $region67: #{tpu_custom_call.1} parent=1 // pred_check_branch
      %2206 = sbr.rel (0) target = $region69
    $region68: #{tpu_custom_call.1} parent=1 // pred_region
      %2207 = dma.done [#allocation5], 32
    $region69: #{tpu_custom_call.1} parent=1 // pred_fallthru
      _
    %2208 = vsyncpa [#allocation4], 1
    %2209 = vsyncpa [#allocation7], 1
    %2210 = vsyncpa [#allocation10], 1
    %2211 = vsyncpa [#allocation5], 1

</llo_original>
